<compile_context>
chip_gen: v7x
topology: tpu7x:2x2x1
jax: 0.10.0
libtpu: 0.0.40
codegen_flags: <defaults>
</compile_context>

<pallas_src>
import functools

import numpy as np
import jax
import jax.numpy as jnp
from jax.experimental import pallas as pl
from jax.experimental.pallas import tpu as pltpu


def _layernorm(x, gamma, beta, eps=1e-5):
    mu = jnp.mean(x, axis=-1, keepdims=True)
    var = jnp.mean(jnp.square(x - mu), axis=-1, keepdims=True)
    return (x - mu) * jax.lax.rsqrt(var + eps) * gamma + beta


def encoder_block_kernel(
    h_ref,                      # (TB, S, dim)      f32  cat([context, query])
    ln1_g_ref, ln1_b_ref,       # (1, 1, dim)       f32
    qkv_w_ref,                  # (1, dim, 3*dim)   bf16 head-major cols, q pre-scaled
    attn_w_ref,                 # (1, dim, dim)     bf16 full output projection
    attn_b_ref,                 # (1, 1, dim)       f32
    ln2_g_ref, ln2_b_ref,       # (1, 1, dim)       f32
    fc1_w_ref, fc1_b_ref,       # (1, dim, 4*dim) bf16 / (1, 1, 4*dim) f32
    fc2_w_ref, fc2_b_ref,       # (1, 4*dim, dim) bf16 / (1, 1, dim)   f32
    out_ref,                    # (TB, S, dim)      f32  residual stream
    *, n_head, head_dim,
):
    TB, S, dim = h_ref.shape
    M = TB * S
    hd = head_dim
    bf16 = jnp.bfloat16
    d = pl.program_id(1)

    # Residual stream is carried in out_ref across the (arbitrary) depth axis.
    # Output blocks are never DMA'd from HBM, so the d==0 init copy from the
    # (aliased) input block is still required.
    @pl.when(d == 0)
    def _():
        out_ref[...] = h_ref[...]

    x = out_ref[...].reshape(M, dim)                    # (TB*S, dim) f32

    # ---------------- attention sub-block (pre-norm MHSA, qkv_bias=False) ----
    hn = _layernorm(x, ln1_g_ref[0], ln1_b_ref[0])
    # qkv_w columns are head-major ([q|k|v] per head) and the 1/sqrt(head_dim)
    # softmax scale is folded into the q columns in the wrapper (free).
    qkv = jnp.dot(hn.astype(bf16), qkv_w_ref[0],
                  preferred_element_type=jnp.float32)   # (M, 3*dim) f32
    qkv = qkv.reshape(TB, S, 3 * dim)

    # heads -> leading batch axis: n_head lane slices (each 3*hd wide, q/k/v of
    # one head contiguous) + a single leading-axis concat.
    per_head = [qkv[:, :, h * 3 * hd:(h + 1) * 3 * hd] for h in range(n_head)]
    hqkv = jnp.concatenate(per_head, axis=0)            # (n_head*TB, S, 3*hd)
    q_b = hqkv[:, :, :hd].astype(bf16)
    k_b = hqkv[:, :, hd:2 * hd].astype(bf16)
    v_b = hqkv[:, :, 2 * hd:].astype(bf16)

    # all heads and batch rows in one batched QK^T / softmax / PV
    # TODO(synk): attn_mask is only supported as None (no additive/bool masking).
    s = jnp.einsum("bqd,bkd->bqk", q_b, k_b,
                   preferred_element_type=jnp.float32)  # (n_head*TB, S, S)
    s = s - jnp.max(s, axis=-1, keepdims=True)
    p = jnp.exp(s)
    p = p * pl.reciprocal(jnp.sum(p, axis=-1, keepdims=True), approx=True)
    o_b = jnp.einsum("bqk,bkd->bqd", p.astype(bf16), v_b,
                     preferred_element_type=jnp.float32)  # (n_head*TB, S, hd)

    # heads back to lanes (original column order) with one lane-axis concat,
    # then ONE full-depth output projection matmul (K = dim -> full MXU depth).
    o = jnp.concatenate([o_b[h * TB:(h + 1) * TB] for h in range(n_head)],
                        axis=-1)                        # (TB, S, dim)
    att = jnp.dot(o.reshape(M, dim).astype(bf16), attn_w_ref[0],
                  preferred_element_type=jnp.float32)   # (M, dim) f32
    x = x + att + attn_b_ref[0]

    # ---------------- MLP sub-block (pre-norm, mlp_ratio = 4) ----------------
    hn = _layernorm(x, ln2_g_ref[0], ln2_b_ref[0])
    h1 = jnp.dot(hn.astype(bf16), fc1_w_ref[0],
                 preferred_element_type=jnp.float32) + fc1_b_ref[0]
    # TODO(synk): nn.GELU default is exact (erf); tanh-approx GELU is used here.
    h1 = jax.nn.gelu(h1, approximate=True)
    x = x + (jnp.dot(h1.astype(bf16), fc2_w_ref[0],
                     preferred_element_type=jnp.float32) + fc2_b_ref[0])

    out_ref[...] = x.reshape(TB, S, dim)


def _permute_qkv_weight(qkv_w, n_head, head_dim):
    """(depth, dim, 3*dim) -> head-major columns [q|k|v per head], q pre-scaled."""
    depth, dim, _ = qkv_w.shape
    wq = qkv_w[..., :dim] * (head_dim ** -0.5)          # fold softmax scale (free)
    wk = qkv_w[..., dim:2 * dim]
    wv = qkv_w[..., 2 * dim:]

    def split(w):
        return w.reshape(depth, dim, n_head, head_dim)

    w = jnp.stack([split(wq), split(wk), split(wv)], axis=3)  # (depth,dim,H,3,hd)
    return w.reshape(depth, dim, 3 * dim)


def _vmem_plan(B, S, dim, n_head, wbytes_layer):
    """Pick the batch-block size TB and a VMEM limit from an explicit footprint."""
    hd = dim // n_head
    try:
        cap = int(pltpu.get_tpu_info().vmem_capacity_bytes)
    except Exception:
        cap = 64 << 20            # conservative default (v7x per-TensorCore VMEM)
    budget = int(cap * 0.7)

    def need_bytes(TB):
        M = TB * S
        b = 2 * wbytes_layer                      # per-layer weights, double-buffered
        b += 2 * 2 * M * dim * 4                  # in + out activation blocks (x2 buf)
        b += 4 * M * dim * 4 + 2 * M * dim * 2    # x / hn / att / o f32 + bf16 casts
        b += M * 3 * dim * (4 + 2)                # qkv f32 + head-batched bf16 q/k/v
        b += n_head * TB * S * S * (4 + 4 + 2)    # scores f32, exp f32, probs bf16
        b += n_head * TB * S * hd * 4             # per-head attention outputs f32
        b += M * 4 * dim * (4 + 4 + 2)            # MLP hidden f32 (+gelu) + bf16 cast
        return b

    # Largest divisor TB of B with TB*S <= 1024 whose footprint fits the budget:
    # cuts per-layer weight re-streaming (nb passes) and fills the MXU M-dim.
    TB = 1
    for t in range(1, B + 1):
        if B % t == 0 and t * S <= 1024 and need_bytes(t) <= budget:
            TB = t
    # TODO(synk): on v7x keep B // TB >= 2 so the 'parallel' batch axis can split
    # across both TensorCores; omitted to keep the sizing generation-agnostic.
    need = need_bytes(TB)
    vmem_limit = int(min(max(need + (16 << 20), 32 << 20), int(cap * 0.9)))
    return TB, vmem_limit


@functools.partial(jax.jit, static_argnames=("depth", "n_head", "head_dim"))
def transformer_encoder_parallel(context, query, params, *, depth, n_head,
                                 head_dim, attn_mask=None):
    """TransformerEncoderParallel.forward (dropout=0)."""
    if attn_mask is not None:
        # TODO(synk): attn_mask support not implemented in the Pallas kernel.
        raise NotImplementedError("attn_mask must be None")

    dim = n_head * head_dim
    B, Sc, _ = context.shape
    Sq = query.shape[1]
    S = Sc + Sq

    h = jnp.concatenate([context, query], axis=1).astype(jnp.float32)  # (B, S, dim)

    bf = jnp.bfloat16
    plist = [
        params["ln1_g"], params["ln1_b"],
        _permute_qkv_weight(params["qkv_w"], n_head, head_dim).astype(bf),
        params["attn_w"].astype(bf),            # kept full (dim, dim): one K=dim matmul
        params["attn_b"],
        params["ln2_g"], params["ln2_b"],
        params["fc1_w"].astype(bf), params["fc1_b"],
        params["fc2_w"].astype(bf), params["fc2_b"],
    ]

    wbytes_layer = sum(int(np.prod(a.shape[1:])) * a.dtype.itemsize for a in plist)
    TB, vmem_limit = _vmem_plan(B, S, dim, n_head, wbytes_layer)
    nb = B // TB

    def wspec(a):
        # per-layer block of a depth-stacked parameter, streamed along the depth axis
        blk = (1,) + tuple(a.shape[1:])
        zeros = (0,) * (a.ndim - 1)
        return pl.BlockSpec(blk, lambda b, d, _z=zeros: (d,) + _z)

    in_specs = ([pl.BlockSpec((TB, S, dim), lambda b, d: (b, 0, 0))]
                + [wspec(a) for a in plist])
    out_specs = pl.BlockSpec((TB, S, dim), lambda b, d: (b, 0, 0))

    kernel = functools.partial(encoder_block_kernel, n_head=n_head, head_dim=head_dim)

    out = pl.pallas_call(
        kernel,
        out_shape=jax.ShapeDtypeStruct((B, S, dim), jnp.float32),
        grid=(nb, depth),
        in_specs=in_specs,
        out_specs=out_specs,
        input_output_aliases={0: 0},   # donate h's HBM buffer to the residual output
        compiler_params=pltpu.CompilerParams(
            dimension_semantics=("parallel", "arbitrary"),
            vmem_limit_bytes=vmem_limit,
        ),
    )(h, *plist)

    return out[:, -Sq:, :]            # keep only the query positions


def init_params(key, dim, depth, n_head, head_dim):
    """Deterministic synthetic parameters (Linear weights pre-transposed to (in, out))."""
    keys = iter(jax.random.split(key, 16))

    def nrm(shape, scale=0.05):
        return (scale * jax.random.normal(next(keys), shape)).astype(jnp.float32)

    return dict(
        ln1_g=1.0 + nrm((depth, 1, dim), 0.01),
        ln1_b=nrm((depth, 1, dim), 0.01),
        qkv_w=nrm((depth, dim, 3 * dim)),      # qkv_bias=False
        attn_w=nrm((depth, dim, dim)),
        attn_b=nrm((depth, 1, dim)),
        ln2_g=1.0 + nrm((depth, 1, dim), 0.01),
        ln2_b=nrm((depth, 1, dim), 0.01),
        fc1_w=nrm((depth, dim, 4 * dim)),
        fc1_b=nrm((depth, 1, 4 * dim)),
        fc2_w=nrm((depth, 4 * dim, dim)),
        fc2_b=nrm((depth, 1, dim)),
    )


def reference(context, query, P, *, depth, n_head, head_dim):
    """Pure-JAX f32 reference mirroring the PyTorch forward (dropout=0, attn_mask=None)."""
    dim = n_head * head_dim
    Sq = query.shape[1]
    x = jnp.concatenate([context, query], axis=1)
    B, S, _ = x.shape

    def ln(t, g, b, eps=1e-5):
        mu = t.mean(-1, keepdims=True)
        var = ((t - mu) ** 2).mean(-1, keepdims=True)
        return (t - mu) / jnp.sqrt(var + eps) * g + b

    for d in range(depth):
        h = ln(x, P["ln1_g"][d], P["ln1_b"][d])
        qkv = h @ P["qkv_w"][d]
        q = qkv[..., :dim].reshape(B, S, n_head, head_dim)
        k = qkv[..., dim:2 * dim].reshape(B, S, n_head, head_dim)
        v = qkv[..., 2 * dim:].reshape(B, S, n_head, head_dim)
        s = jnp.einsum("bqhd,bkhd->bhqk", q, k) * head_dim ** -0.5
        p = jax.nn.softmax(s, axis=-1)
        o = jnp.einsum("bhqk,bkhd->bqhd", p, v).reshape(B, S, dim)
        x = x + o @ P["attn_w"][d] + P["attn_b"][d]
        h = ln(x, P["ln2_g"][d], P["ln2_b"][d])
        x = x + jax.nn.gelu(h @ P["fc1_w"][d] + P["fc1_b"][d],
                            approximate=True) @ P["fc2_w"][d] + P["fc2_b"][d]
    return x[:, -Sq:, :]


if __name__ == "__main__":
    # module config: dim = n_head * head_dim, ff_dim=None, dropout=0
    dim, depth, n_head, head_dim = 32, 2, 4, 8
    B, Sc, Sq = 2, 4, 4

    key = jax.random.PRNGKey(0)
    k_c, k_q, k_p = jax.random.split(key, 3)
    context = jax.random.normal(k_c, (B, Sc, dim), jnp.float32)
    query = jax.random.normal(k_q, (B, Sq, dim), jnp.float32)
    params = init_params(k_p, dim, depth, n_head, head_dim)

    out = transformer_encoder_parallel(
        context, query, params, depth=depth, n_head=n_head, head_dim=head_dim)
    out = jax.block_until_ready(out)

    ref = reference(context, query, params,
                    depth=depth, n_head=n_head, head_dim=head_dim)

    assert out.shape == (B, Sq, dim), out.shape
    # kernel runs matmuls in bf16 (f32 accumulate); compare against the f32 reference
    np.testing.assert_allclose(np.asarray(out), np.asarray(ref), rtol=2e-2, atol=2e-2)
    print("KERNEL_OK")
</pallas_src>

<mosaic_0001>
module attributes {stable_mosaic.version = 11 : i64} {
  func.func @encoder_block_kernel(%arg0: i32, %arg1: i32, %arg2: memref<2x8x32xf32, #tpu.memory_space<vmem>>, %arg3: memref<1x1x32xf32, #tpu.memory_space<vmem>>, %arg4: memref<1x1x32xf32, #tpu.memory_space<vmem>>, %arg5: memref<1x32x96xbf16, #tpu.memory_space<vmem>>, %arg6: memref<1x32x32xbf16, #tpu.memory_space<vmem>>, %arg7: memref<1x1x32xf32, #tpu.memory_space<vmem>>, %arg8: memref<1x1x32xf32, #tpu.memory_space<vmem>>, %arg9: memref<1x1x32xf32, #tpu.memory_space<vmem>>, %arg10: memref<1x32x128xbf16, #tpu.memory_space<vmem>>, %arg11: memref<1x1x128xf32, #tpu.memory_space<vmem>>, %arg12: memref<1x128x32xbf16, #tpu.memory_space<vmem>>, %arg13: memref<1x1x32xf32, #tpu.memory_space<vmem>>, %arg14: memref<2x8x32xf32, #tpu.memory_space<vmem>>) attributes {dimension_semantics = [#tpu.dimension_semantics<parallel>, #tpu.dimension_semantics<arbitrary>], iteration_bounds = array<i64: 1, 2>, scalar_prefetch = 0 : i64, scratch_operands = 0 : i64, tpu.core_type = #tpu.core_type<tc>, window_params = [{transform_indices = @transform_0, window_bounds = array<i64: 2, 8, 32>}, {transform_indices = @transform_1, window_bounds = array<i64: 1, 1, 32>}, {transform_indices = @transform_2, window_bounds = array<i64: 1, 1, 32>}, {transform_indices = @transform_3, window_bounds = array<i64: 1, 32, 96>}, {transform_indices = @transform_4, window_bounds = array<i64: 1, 32, 32>}, {transform_indices = @transform_5, window_bounds = array<i64: 1, 1, 32>}, {transform_indices = @transform_6, window_bounds = array<i64: 1, 1, 32>}, {transform_indices = @transform_7, window_bounds = array<i64: 1, 1, 32>}, {transform_indices = @transform_8, window_bounds = array<i64: 1, 32, 128>}, {transform_indices = @transform_9, window_bounds = array<i64: 1, 1, 128>}, {transform_indices = @transform_10, window_bounds = array<i64: 1, 128, 32>}, {transform_indices = @transform_11, window_bounds = array<i64: 1, 1, 32>}, {transform_indices = @transform_12, window_bounds = array<i64: 2, 8, 32>}]} {
    %c0_i32 = arith.constant 0 : i32
    %0 = arith.cmpi eq, %arg1, %c0_i32 : i32
    %1 = arith.extui %0 : i1 to i32
    %c0_i32_0 = arith.constant 0 : i32
    %2 = arith.cmpi ne, %1, %c0_i32_0 : i32
    scf.if %2 {
      %c0_60 = arith.constant 0 : index
      %c0_61 = arith.constant 0 : index
      %c0_62 = arith.constant 0 : index
      %133 = vector.load %arg2[%c0_60, %c0_61, %c0_62] : memref<2x8x32xf32, #tpu.memory_space<vmem>>, vector<2x8x32xf32>
      %c0_63 = arith.constant 0 : index
      %c0_64 = arith.constant 0 : index
      %c0_65 = arith.constant 0 : index
      %134 = vector.load %arg14[%c0_63, %c0_64, %c0_65] : memref<2x8x32xf32, #tpu.memory_space<vmem>>, vector<2x8x32xf32>
      tpu.vector_store %arg14[%c0_63, %c0_64, %c0_65], %133 {strides = array<i32>} : memref<2x8x32xf32, #tpu.memory_space<vmem>>, vector<2x8x32xf32>,
    } else {
    }
    %c0 = arith.constant 0 : index
    %c0_1 = arith.constant 0 : index
    %c0_2 = arith.constant 0 : index
    %3 = vector.load %arg14[%c0, %c0_1, %c0_2] : memref<2x8x32xf32, #tpu.memory_space<vmem>>, vector<2x8x32xf32>
    %4 = vector.shape_cast %3 : vector<2x8x32xf32> to vector<16x32xf32>
    %c0_3 = arith.constant 0 : index
    %c0_4 = arith.constant 0 : index
    %c0_5 = arith.constant 0 : index
    %5 = vector.load %arg3[%c0_3, %c0_4, %c0_5] : memref<1x1x32xf32, #tpu.memory_space<vmem>>, vector<1x1x32xf32>
    %6 = vector.shape_cast %5 : vector<1x1x32xf32> to vector<1x32xf32>
    %c0_6 = arith.constant 0 : index
    %c0_7 = arith.constant 0 : index
    %c0_8 = arith.constant 0 : index
    %7 = vector.load %arg4[%c0_6, %c0_7, %c0_8] : memref<1x1x32xf32, #tpu.memory_space<vmem>>, vector<1x1x32xf32>
    %8 = vector.shape_cast %7 : vector<1x1x32xf32> to vector<1x32xf32>
    %cst = arith.constant dense<0.000000e+00> : vector<16xf32>
    %9 = vector.multi_reduction <add>, %4, %cst [1] : vector<16x32xf32> to vector<16xf32>
    %10 = vector.shape_cast %9 : vector<16xf32> to vector<16x1xf32>
    %cst_9 = arith.constant 3.200000e+01 : f32
    %11 = vector.broadcast %cst_9 : f32 to vector<16x1xf32>
    %12 = arith.divf %10, %11 : vector<16x1xf32>
    %13 = vector.broadcast %12 : vector<16x1xf32> to vector<16x32xf32>
    %14 = arith.subf %4, %13 : vector<16x32xf32>
    %15 = arith.mulf %14, %14 : vector<16x32xf32>
    %cst_10 = arith.constant dense<0.000000e+00> : vector<16xf32>
    %16 = vector.multi_reduction <add>, %15, %cst_10 [1] : vector<16x32xf32> to vector<16xf32>
    %17 = vector.shape_cast %16 : vector<16xf32> to vector<16x1xf32>
    %cst_11 = arith.constant 3.200000e+01 : f32
    %18 = vector.broadcast %cst_11 : f32 to vector<16x1xf32>
    %19 = arith.divf %17, %18 : vector<16x1xf32>
    %20 = vector.broadcast %12 : vector<16x1xf32> to vector<16x32xf32>
    %21 = arith.subf %4, %20 : vector<16x32xf32>
    %cst_12 = arith.constant 9.99999974E-6 : f32
    %22 = vector.broadcast %cst_12 : f32 to vector<16x1xf32>
    %23 = arith.addf %19, %22 : vector<16x1xf32>
    %24 = math.rsqrt %23 : vector<16x1xf32>
    %25 = vector.broadcast %24 : vector<16x1xf32> to vector<16x32xf32>
    %26 = arith.mulf %21, %25 : vector<16x32xf32>
    %27 = vector.broadcast %6 : vector<1x32xf32> to vector<16x32xf32>
    %28 = arith.mulf %26, %27 : vector<16x32xf32>
    %29 = vector.broadcast %8 : vector<1x32xf32> to vector<16x32xf32>
    %30 = arith.addf %28, %29 : vector<16x32xf32>
    %31 = arith.truncf %30 : vector<16x32xf32> to vector<16x32xbf16>
    %c0_13 = arith.constant 0 : index
    %c0_14 = arith.constant 0 : index
    %c0_15 = arith.constant 0 : index
    %32 = vector.load %arg5[%c0_13, %c0_14, %c0_15] : memref<1x32x96xbf16, #tpu.memory_space<vmem>>, vector<1x32x96xbf16>
    %33 = vector.shape_cast %32 : vector<1x32x96xbf16> to vector<32x96xbf16>
    %cst_16 = arith.constant dense<0.000000e+00> : vector<16x96xf32>
    %34 = tpu.matmul %31, %33, %cst_16 {dimension_numbers = #tpu.dot_dimension_numbers<[1], [0], [0], [1], [0, 0, 1, 1], [], []>} : vector<16x32xbf16>, vector<32x96xbf16>, vector<16x96xf32> -> vector<16x96xf32>
    %35 = vector.shape_cast %34 : vector<16x96xf32> to vector<2x8x96xf32>
    %36 = vector.extract_strided_slice %35 {offsets = [0, 0, 0], sizes = [2, 8, 24], strides = [1, 1, 1]} : vector<2x8x96xf32> to vector<2x8x24xf32>
    %37 = vector.extract_strided_slice %35 {offsets = [0, 0, 24], sizes = [2, 8, 24], strides = [1, 1, 1]} : vector<2x8x96xf32> to vector<2x8x24xf32>
    %38 = vector.extract_strided_slice %35 {offsets = [0, 0, 48], sizes = [2, 8, 24], strides = [1, 1, 1]} : vector<2x8x96xf32> to vector<2x8x24xf32>
    %39 = vector.extract_strided_slice %35 {offsets = [0, 0, 72], sizes = [2, 8, 24], strides = [1, 1, 1]} : vector<2x8x96xf32> to vector<2x8x24xf32>
    %40 = tpu.concatenate %36, %37, %38, %39 in 0 : vector<2x8x24xf32>, vector<2x8x24xf32>, vector<2x8x24xf32>, vector<2x8x24xf32> -> vector<8x8x24xf32>
    %41 = vector.extract_strided_slice %40 {offsets = [0, 0, 0], sizes = [8, 8, 8], strides = [1, 1, 1]} : vector<8x8x24xf32> to vector<8x8x8xf32>
    %42 = arith.truncf %41 : vector<8x8x8xf32> to vector<8x8x8xbf16>
    %43 = vector.extract_strided_slice %40 {offsets = [0, 0, 8], sizes = [8, 8, 8], strides = [1, 1, 1]} : vector<8x8x24xf32> to vector<8x8x8xf32>
    %44 = arith.truncf %43 : vector<8x8x8xf32> to vector<8x8x8xbf16>
    %45 = vector.extract_strided_slice %40 {offsets = [0, 0, 16], sizes = [8, 8, 8], strides = [1, 1, 1]} : vector<8x8x24xf32> to vector<8x8x8xf32>
    %46 = arith.truncf %45 : vector<8x8x8xf32> to vector<8x8x8xbf16>
    "tpu.trace_start"() <{level = 10 : i32, message = "bqd,bkd->bqk"}> : () -> ()
    %cst_17 = arith.constant dense<0.000000e+00> : vector<8x8x8xf32>
    %47 = tpu.matmul %42, %44, %cst_17 {dimension_numbers = #tpu.dot_dimension_numbers<[2], [2], [1], [1], [0, 0, 0, 1, 1, 1], [0], [0]>} : vector<8x8x8xbf16>, vector<8x8x8xbf16>, vector<8x8x8xf32> -> vector<8x8x8xf32>
    "tpu.trace_stop"() : () -> ()
    %cst_18 = arith.constant dense<0xFF800000> : vector<8x8xf32>
    %48 = vector.multi_reduction <maximumf>, %47, %cst_18 [2] : vector<8x8x8xf32> to vector<8x8xf32>
    %49 = vector.shape_cast %48 : vector<8x8xf32> to vector<8x8x1xf32>
    %50 = vector.broadcast %49 : vector<8x8x1xf32> to vector<8x8x8xf32>
    %51 = arith.subf %47, %50 : vector<8x8x8xf32>
    %52 = math.exp %51 : vector<8x8x8xf32>
    %cst_19 = arith.constant dense<0.000000e+00> : vector<8x8xf32>
    %53 = vector.multi_reduction <add>, %52, %cst_19 [2] : vector<8x8x8xf32> to vector<8x8xf32>
    %54 = vector.shape_cast %53 : vector<8x8xf32> to vector<8x8x1xf32>
    %55 = tpu.reciprocal %54 {approx = true} : vector<8x8x1xf32> -> vector<8x8x1xf32>
    %56 = vector.broadcast %55 : vector<8x8x1xf32> to vector<8x8x8xf32>
    %57 = arith.mulf %52, %56 : vector<8x8x8xf32>
    %58 = arith.truncf %57 : vector<8x8x8xf32> to vector<8x8x8xbf16>
    "tpu.trace_start"() <{level = 10 : i32, message = "bqk,bkd->bqd"}> : () -> ()
    %cst_20 = arith.constant dense<0.000000e+00> : vector<8x8x8xf32>
    %59 = tpu.matmul %58, %46, %cst_20 {dimension_numbers = #tpu.dot_dimension_numbers<[2], [1], [1], [2], [0, 0, 0, 1, 1, 2], [0], [0]>} : vector<8x8x8xbf16>, vector<8x8x8xbf16>, vector<8x8x8xf32> -> vector<8x8x8xf32>
    "tpu.trace_stop"() : () -> ()
    %60 = vector.extract_strided_slice %59 {offsets = [0, 0, 0], sizes = [2, 8, 8], strides = [1, 1, 1]} : vector<8x8x8xf32> to vector<2x8x8xf32>
    %61 = vector.extract_strided_slice %59 {offsets = [2, 0, 0], sizes = [2, 8, 8], strides = [1, 1, 1]} : vector<8x8x8xf32> to vector<2x8x8xf32>
    %62 = vector.extract_strided_slice %59 {offsets = [4, 0, 0], sizes = [2, 8, 8], strides = [1, 1, 1]} : vector<8x8x8xf32> to vector<2x8x8xf32>
    %63 = vector.extract_strided_slice %59 {offsets = [6, 0, 0], sizes = [2, 8, 8], strides = [1, 1, 1]} : vector<8x8x8xf32> to vector<2x8x8xf32>
    %64 = tpu.concatenate %60, %61, %62, %63 in 2 : vector<2x8x8xf32>, vector<2x8x8xf32>, vector<2x8x8xf32>, vector<2x8x8xf32> -> vector<2x8x32xf32>
    %65 = vector.shape_cast %64 : vector<2x8x32xf32> to vector<16x32xf32>
    %66 = arith.truncf %65 : vector<16x32xf32> to vector<16x32xbf16>
    %c0_21 = arith.constant 0 : index
    %c0_22 = arith.constant 0 : index
    %c0_23 = arith.constant 0 : index
    %67 = vector.load %arg6[%c0_21, %c0_22, %c0_23] : memref<1x32x32xbf16, #tpu.memory_space<vmem>>, vector<1x32x32xbf16>
    %68 = vector.shape_cast %67 : vector<1x32x32xbf16> to vector<32x32xbf16>
    %cst_24 = arith.constant dense<0.000000e+00> : vector<16x32xf32>
    %69 = tpu.matmul %66, %68, %cst_24 {dimension_numbers = #tpu.dot_dimension_numbers<[1], [0], [0], [1], [0, 0, 1, 1], [], []>} : vector<16x32xbf16>, vector<32x32xbf16>, vector<16x32xf32> -> vector<16x32xf32>
    %70 = arith.addf %4, %69 : vector<16x32xf32>
    %c0_25 = arith.constant 0 : index
    %c0_26 = arith.constant 0 : index
    %c0_27 = arith.constant 0 : index
    %71 = vector.load %arg7[%c0_25, %c0_26, %c0_27] : memref<1x1x32xf32, #tpu.memory_space<vmem>>, vector<1x1x32xf32>
    %72 = vector.shape_cast %71 : vector<1x1x32xf32> to vector<1x32xf32>
    %73 = vector.broadcast %72 : vector<1x32xf32> to vector<16x32xf32>
    %74 = arith.addf %70, %73 : vector<16x32xf32>
    %c0_28 = arith.constant 0 : index
    %c0_29 = arith.constant 0 : index
    %c0_30 = arith.constant 0 : index
    %75 = vector.load %arg8[%c0_28, %c0_29, %c0_30] : memref<1x1x32xf32, #tpu.memory_space<vmem>>, vector<1x1x32xf32>
    %76 = vector.shape_cast %75 : vector<1x1x32xf32> to vector<1x32xf32>
    %c0_31 = arith.constant 0 : index
    %c0_32 = arith.constant 0 : index
    %c0_33 = arith.constant 0 : index
    %77 = vector.load %arg9[%c0_31, %c0_32, %c0_33] : memref<1x1x32xf32, #tpu.memory_space<vmem>>, vector<1x1x32xf32>
    %78 = vector.shape_cast %77 : vector<1x1x32xf32> to vector<1x32xf32>
    %cst_34 = arith.constant dense<0.000000e+00> : vector<16xf32>
    %79 = vector.multi_reduction <add>, %74, %cst_34 [1] : vector<16x32xf32> to vector<16xf32>
    %80 = vector.shape_cast %79 : vector<16xf32> to vector<16x1xf32>
    %cst_35 = arith.constant 3.200000e+01 : f32
    %81 = vector.broadcast %cst_35 : f32 to vector<16x1xf32>
    %82 = arith.divf %80, %81 : vector<16x1xf32>
    %83 = vector.broadcast %82 : vector<16x1xf32> to vector<16x32xf32>
    %84 = arith.subf %74, %83 : vector<16x32xf32>
    %85 = arith.mulf %84, %84 : vector<16x32xf32>
    %cst_36 = arith.constant dense<0.000000e+00> : vector<16xf32>
    %86 = vector.multi_reduction <add>, %85, %cst_36 [1] : vector<16x32xf32> to vector<16xf32>
    %87 = vector.shape_cast %86 : vector<16xf32> to vector<16x1xf32>
    %cst_37 = arith.constant 3.200000e+01 : f32
    %88 = vector.broadcast %cst_37 : f32 to vector<16x1xf32>
    %89 = arith.divf %87, %88 : vector<16x1xf32>
    %90 = vector.broadcast %82 : vector<16x1xf32> to vector<16x32xf32>
    %91 = arith.subf %74, %90 : vector<16x32xf32>
    %cst_38 = arith.constant 9.99999974E-6 : f32
    %92 = vector.broadcast %cst_38 : f32 to vector<16x1xf32>
    %93 = arith.addf %89, %92 : vector<16x1xf32>
    %94 = math.rsqrt %93 : vector<16x1xf32>
    %95 = vector.broadcast %94 : vector<16x1xf32> to vector<16x32xf32>
    %96 = arith.mulf %91, %95 : vector<16x32xf32>
    %97 = vector.broadcast %76 : vector<1x32xf32> to vector<16x32xf32>
    %98 = arith.mulf %96, %97 : vector<16x32xf32>
    %99 = vector.broadcast %78 : vector<1x32xf32> to vector<16x32xf32>
    %100 = arith.addf %98, %99 : vector<16x32xf32>
    %101 = arith.truncf %100 : vector<16x32xf32> to vector<16x32xbf16>
    %c0_39 = arith.constant 0 : index
    %c0_40 = arith.constant 0 : index
    %c0_41 = arith.constant 0 : index
    %102 = vector.load %arg10[%c0_39, %c0_40, %c0_41] : memref<1x32x128xbf16, #tpu.memory_space<vmem>>, vector<1x32x128xbf16>
    %103 = vector.shape_cast %102 : vector<1x32x128xbf16> to vector<32x128xbf16>
    %cst_42 = arith.constant dense<0.000000e+00> : vector<16x128xf32>
    %104 = tpu.matmul %101, %103, %cst_42 {dimension_numbers = #tpu.dot_dimension_numbers<[1], [0], [0], [1], [0, 0, 1, 1], [], []>} : vector<16x32xbf16>, vector<32x128xbf16>, vector<16x128xf32> -> vector<16x128xf32>
    %c0_43 = arith.constant 0 : index
    %c0_44 = arith.constant 0 : index
    %c0_45 = arith.constant 0 : index
    %105 = vector.load %arg11[%c0_43, %c0_44, %c0_45] : memref<1x1x128xf32, #tpu.memory_space<vmem>>, vector<1x1x128xf32>
    %106 = vector.shape_cast %105 : vector<1x1x128xf32> to vector<1x128xf32>
    %107 = vector.broadcast %106 : vector<1x128xf32> to vector<16x128xf32>
    %108 = arith.addf %104, %107 : vector<16x128xf32>
    %109 = arith.mulf %108, %108 : vector<16x128xf32>
    %110 = arith.mulf %108, %109 : vector<16x128xf32>
    %cst_46 = arith.constant 4.471500e-02 : f32
    %111 = vector.broadcast %cst_46 : f32 to vector<16x128xf32>
    %112 = arith.mulf %111, %110 : vector<16x128xf32>
    %113 = arith.addf %108, %112 : vector<16x128xf32>
    %cst_47 = arith.constant 0.797884583 : f32
    %114 = vector.broadcast %cst_47 : f32 to vector<16x128xf32>
    %115 = arith.mulf %114, %113 : vector<16x128xf32>
    %116 = math.tanh %115 : vector<16x128xf32>
    %cst_48 = arith.constant 1.000000e+00 : f32
    %117 = vector.broadcast %cst_48 : f32 to vector<16x128xf32>
    %118 = arith.addf %117, %116 : vector<16x128xf32>
    %cst_49 = arith.constant 5.000000e-01 : f32
    %119 = vector.broadcast %cst_49 : f32 to vector<16x128xf32>
    %120 = arith.mulf %119, %118 : vector<16x128xf32>
    %121 = arith.mulf %108, %120 : vector<16x128xf32>
    %122 = arith.truncf %121 : vector<16x128xf32> to vector<16x128xbf16>
    %c0_50 = arith.constant 0 : index
    %c0_51 = arith.constant 0 : index
    %c0_52 = arith.constant 0 : index
    %123 = vector.load %arg12[%c0_50, %c0_51, %c0_52] : memref<1x128x32xbf16, #tpu.memory_space<vmem>>, vector<1x128x32xbf16>
    %124 = vector.shape_cast %123 : vector<1x128x32xbf16> to vector<128x32xbf16>
    %cst_53 = arith.constant dense<0.000000e+00> : vector<16x32xf32>
    %125 = tpu.matmul %122, %124, %cst_53 {dimension_numbers = #tpu.dot_dimension_numbers<[1], [0], [0], [1], [0, 0, 1, 1], [], []>} : vector<16x128xbf16>, vector<128x32xbf16>, vector<16x32xf32> -> vector<16x32xf32>
    %c0_54 = arith.constant 0 : index
    %c0_55 = arith.constant 0 : index
    %c0_56 = arith.constant 0 : index
    %126 = vector.load %arg13[%c0_54, %c0_55, %c0_56] : memref<1x1x32xf32, #tpu.memory_space<vmem>>, vector<1x1x32xf32>
    %127 = vector.shape_cast %126 : vector<1x1x32xf32> to vector<1x32xf32>
    %128 = vector.broadcast %127 : vector<1x32xf32> to vector<16x32xf32>
    %129 = arith.addf %125, %128 : vector<16x32xf32>
    %130 = arith.addf %74, %129 : vector<16x32xf32>
    %131 = vector.shape_cast %130 : vector<16x32xf32> to vector<2x8x32xf32>
    %c0_57 = arith.constant 0 : index
    %c0_58 = arith.constant 0 : index
    %c0_59 = arith.constant 0 : index
    %132 = vector.load %arg14[%c0_57, %c0_58, %c0_59] : memref<2x8x32xf32, #tpu.memory_space<vmem>>, vector<2x8x32xf32>
    tpu.vector_store %arg14[%c0_57, %c0_58, %c0_59], %131 {strides = array<i32>} : memref<2x8x32xf32, #tpu.memory_space<vmem>>, vector<2x8x32xf32>,
    return
  }
  func.func @transform_0(%arg0: i32, %arg1: i32) -> (i32, i32, i32) {
    %c0_i32 = arith.constant 0 : i32
    %c0_i32_0 = arith.constant 0 : i32
    %c0_i32_1 = arith.constant 0 : i32
    return %arg0, %c0_i32, %c0_i32_0 : i32, i32, i32
  }
  func.func @transform_1(%arg0: i32, %arg1: i32) -> (i32, i32, i32) {
    %c0_i32 = arith.constant 0 : i32
    %c0_i32_0 = arith.constant 0 : i32
    %c0_i32_1 = arith.constant 0 : i32
    return %arg1, %c0_i32, %c0_i32_0 : i32, i32, i32
  }
  func.func @transform_2(%arg0: i32, %arg1: i32) -> (i32, i32, i32) {
    %c0_i32 = arith.constant 0 : i32
    %c0_i32_0 = arith.constant 0 : i32
    %c0_i32_1 = arith.constant 0 : i32
    return %arg1, %c0_i32, %c0_i32_0 : i32, i32, i32
  }
  func.func @transform_3(%arg0: i32, %arg1: i32) -> (i32, i32, i32) {
    %c0_i32 = arith.constant 0 : i32
    %c0_i32_0 = arith.constant 0 : i32
    %c0_i32_1 = arith.constant 0 : i32
    return %arg1, %c0_i32, %c0_i32_0 : i32, i32, i32
  }
  func.func @transform_4(%arg0: i32, %arg1: i32) -> (i32, i32, i32) {
    %c0_i32 = arith.constant 0 : i32
    %c0_i32_0 = arith.constant 0 : i32
    %c0_i32_1 = arith.constant 0 : i32
    return %arg1, %c0_i32, %c0_i32_0 : i32, i32, i32
  }
  func.func @transform_5(%arg0: i32, %arg1: i32) -> (i32, i32, i32) {
    %c0_i32 = arith.constant 0 : i32
    %c0_i32_0 = arith.constant 0 : i32
    %c0_i32_1 = arith.constant 0 : i32
    return %arg1, %c0_i32, %c0_i32_0 : i32, i32, i32
  }
  func.func @transform_6(%arg0: i32, %arg1: i32) -> (i32, i32, i32) {
    %c0_i32 = arith.constant 0 : i32
    %c0_i32_0 = arith.constant 0 : i32
    %c0_i32_1 = arith.constant 0 : i32
    return %arg1, %c0_i32, %c0_i32_0 : i32, i32, i32
  }
  func.func @transform_7(%arg0: i32, %arg1: i32) -> (i32, i32, i32) {
    %c0_i32 = arith.constant 0 : i32
    %c0_i32_0 = arith.constant 0 : i32
    %c0_i32_1 = arith.constant 0 : i32
    return %arg1, %c0_i32, %c0_i32_0 : i32, i32, i32
  }
  func.func @transform_8(%arg0: i32, %arg1: i32) -> (i32, i32, i32) {
    %c0_i32 = arith.constant 0 : i32
    %c0_i32_0 = arith.constant 0 : i32
    %c0_i32_1 = arith.constant 0 : i32
    return %arg1, %c0_i32, %c0_i32_0 : i32, i32, i32
  }
  func.func @transform_9(%arg0: i32, %arg1: i32) -> (i32, i32, i32) {
    %c0_i32 = arith.constant 0 : i32
    %c0_i32_0 = arith.constant 0 : i32
    %c0_i32_1 = arith.constant 0 : i32
    return %arg1, %c0_i32, %c0_i32_0 : i32, i32, i32
  }
  func.func @transform_10(%arg0: i32, %arg1: i32) -> (i32, i32, i32) {
    %c0_i32 = arith.constant 0 : i32
    %c0_i32_0 = arith.constant 0 : i32
    %c0_i32_1 = arith.constant 0 : i32
    return %arg1, %c0_i32, %c0_i32_0 : i32, i32, i32
  }
  func.func @transform_11(%arg0: i32, %arg1: i32) -> (i32, i32, i32) {
    %c0_i32 = arith.constant 0 : i32
    %c0_i32_0 = arith.constant 0 : i32
    %c0_i32_1 = arith.constant 0 : i32
    return %arg1, %c0_i32, %c0_i32_0 : i32, i32, i32
  }
  func.func @transform_12(%arg0: i32, %arg1: i32) -> (i32, i32, i32) {
    %c0_i32 = arith.constant 0 : i32
    %c0_i32_0 = arith.constant 0 : i32
    %c0_i32_1 = arith.constant 0 : i32
    return %arg0, %c0_i32, %c0_i32_0 : i32, i32, i32
  }
}

</mosaic_0001>

<llo_original>
// kernel: transformer_encoder_parallel.1
$region0: #{transformer_encoder_parallel.1}
  #allocation0 [shape = 'u32[]', space=smem, size = 0x4, offset = 0x4, fixed_abs, tag = 'smem constant byte address 0x4 - core index']
  #allocation1 [shape = 'u32[144,128]{1,0:T(1,128)}', space=vmem, size = 0x12000, scoped, tag = 'internal scratch']
  %s0 = inlined_call_operand.vmem [shape: f32[2,8,32], index: 0, kind: input, shape index: {}, may-alias: {0,12}]
  %s1 = inlined_call_operand.vmem [shape: f32[2,1,32], index: 1, kind: input, shape index: {}]
  %s2 = inlined_call_operand.vmem [shape: f32[2,1,32], index: 2, kind: input, shape index: {}]
  %s3 = inlined_call_operand.vmem [shape: bf16[2,32,96], index: 3, kind: input, shape index: {}]
  %s4 = inlined_call_operand.vmem [shape: bf16[2,32,32], index: 4, kind: input, shape index: {}]
  %s5 = inlined_call_operand.vmem [shape: f32[2,1,32], index: 5, kind: input, shape index: {}]
  %s6 = inlined_call_operand.vmem [shape: f32[2,1,32], index: 6, kind: input, shape index: {}]
  %s7 = inlined_call_operand.vmem [shape: f32[2,1,32], index: 7, kind: input, shape index: {}]
  %s8 = inlined_call_operand.vmem [shape: bf16[2,32,128], index: 8, kind: input, shape index: {}]
  %s9 = inlined_call_operand.vmem [shape: f32[2,1,128], index: 9, kind: input, shape index: {}]
  %s10 = inlined_call_operand.vmem [shape: bf16[2,128,32], index: 10, kind: input, shape index: {}]
  %s11 = inlined_call_operand.vmem [shape: f32[2,1,32], index: 11, kind: input, shape index: {}]
  %s12 = inlined_call_operand.vmem [shape: f32[2,8,32], index: 12, kind: output, shape index: {}, may-alias: {0,12}]
  %s13 = sld [smem:[#allocation0]]
  $region85: #{transformer_encoder_parallel.1} parent=0
    _
  %s15 = ssub.s32 1, %s13
  %s16 = scalar_select 0, %s15, %s13
  loop: start=0, step=1, limit=4
  $region2: #{transformer_encoder_parallel.1} parent=0 // loop_pre_header
    _
  $region3: #{transformer_encoder_parallel.1} parent=0 // loop_header
    %s18 = sphi 0, %s22
    %p19 = scmp.ge.s32.totalorder %s18, 4
    %s25 = sphi 0, %s37
    %s26 = sphi 0, %s33
    %s27 = sphi 0, %s25
    %s28 = sphi 0, %s26
    %s29 = sphi 0, %s27
    %s30 = sphi 0, %s28
    %s40 = sphi 0, %s42
    %s43 = sphi 0, %s40
    %s44 = sphi 0, %s43
    %s60 = sphi 0, %s44
    %s66 = sphi 0, %s68
    %s69 = sphi 0, %s66
    %s70 = sphi 0, %s69
    %s86 = sphi 0, %s70
    %s92 = sphi 0, %s94
    %s95 = sphi 0, %s92
    %s96 = sphi 0, %s95
    %s112 = sphi 0, %s96
    %s118 = sphi 0, %s120
    %s121 = sphi 0, %s118
    %s122 = sphi 0, %s121
    %s138 = sphi 0, %s122
    %s144 = sphi 0, %s146
    %s147 = sphi 0, %s144
    %s148 = sphi 0, %s147
    %s164 = sphi 0, %s148
    %s170 = sphi 0, %s172
    %s173 = sphi 0, %s170
    %s174 = sphi 0, %s173
    %s190 = sphi 0, %s174
    %s196 = sphi 0, %s198
    %s199 = sphi 0, %s196
    %s200 = sphi 0, %s199
    %s216 = sphi 0, %s200
    %s222 = sphi 0, %s224
    %s225 = sphi 0, %s222
    %s226 = sphi 0, %s225
    %s242 = sphi 0, %s226
    %s248 = sphi 0, %s250
    %s251 = sphi 0, %s248
    %s252 = sphi 0, %s251
    %s268 = sphi 0, %s252
    %s274 = sphi 0, %s276
    %s277 = sphi 0, %s274
    %s278 = sphi 0, %s277
    %s294 = sphi 0, %s278
    %s300 = sphi 0, %s302
    %s303 = sphi 0, %s300
    %s304 = sphi 0, %s303
    %s320 = sphi 0, %s304
    %s326 = sphi 0, %s328
    %s329 = sphi 0, %s326
    %s330 = sphi 0, %s329
    %s346 = sphi 0, %s330
    %s352 = sphi 0, %s354
    %s355 = sphi 0, %s352
    %s356 = sphi 0, %s355
    %s372 = sphi 0, %s356
  $region4: #{transformer_encoder_parallel.1} parent=0 // loop_header_branch
    %21 = sbr.rel (%p19) target = $region8
  $region5: #{transformer_encoder_parallel.1} parent=0 // loop_body
    %s23 = ssub.s32 %s18, 1
    %s24 = ssub.s32 %s18, 2
    %s31 = sadd.s32 1, %s26
    %p32 = scmp.ge.s32.totalorder %s31, 2
    %s33 = scalar_select %p32, 0, %s31
    %s34 = sadd.s32 1, %s25
    %s35 = scalar_select %p32, %s34, %s25
    %p36 = scmp.ge.s32.totalorder %s35, 1
    %s37 = scalar_select %p36, 0, %s35
    %s38 = ssub.s32 %s25, %s37
    %p39 = scmp.eq.s32.totalorder %s38, 0
    %s41 = sadd.s32 %s40, 1
    %s42 = scalar_select %p39, %s40, %s41
    %p45 = pneg %p39
    %p46 = scmp.eq.s32.totalorder %s18, 1
    %p47 = por %p45, %p46
    %p48 = scmp.ne.s32.totalorder %s40, %s43
    %p49 = scmp.eq.s32.totalorder %s18, 0
    %p50 = por %p48, %p49
    %p51 = scmp.ne.s32.totalorder %s40, %s43
    %p52 = scmp.eq.s32.totalorder %s23, 1
    %p53 = por %p51, %p52
    %p54 = scmp.ne.s32.totalorder %s43, %s44
    %p55 = scmp.eq.s32.totalorder %s23, 0
    %p56 = por %p54, %p55
    %p57 = scmp.ne.s32.totalorder %s43, %s44
    %p58 = scmp.eq.s32.totalorder %s24, 1
    %p59 = por %p57, %p58
    %p61 = scmp.ne.s32.totalorder %s44, %s60
    %p62 = scmp.eq.s32.totalorder %s24, 0
    %p63 = por %p61, %p62
    %s64 = ssub.s32 %s26, %s33
    %p65 = scmp.eq.s32.totalorder %s64, 0
    %s67 = sadd.s32 %s66, 1
    %s68 = scalar_select %p65, %s66, %s67
    %p71 = pneg %p65
    %p72 = scmp.eq.s32.totalorder %s18, 1
    %p73 = por %p71, %p72
    %p74 = scmp.ne.s32.totalorder %s66, %s69
    %p75 = scmp.eq.s32.totalorder %s18, 0
    %p76 = por %p74, %p75
    %p77 = scmp.ne.s32.totalorder %s66, %s69
    %p78 = scmp.eq.s32.totalorder %s23, 1
    %p79 = por %p77, %p78
    %p80 = scmp.ne.s32.totalorder %s69, %s70
    %p81 = scmp.eq.s32.totalorder %s23, 0
    %p82 = por %p80, %p81
    %p83 = scmp.ne.s32.totalorder %s69, %s70
    %p84 = scmp.eq.s32.totalorder %s24, 1
    %p85 = por %p83, %p84
    %p87 = scmp.ne.s32.totalorder %s70, %s86
    %p88 = scmp.eq.s32.totalorder %s24, 0
    %p89 = por %p87, %p88
    %s90 = ssub.s32 %s26, %s33
    %p91 = scmp.eq.s32.totalorder %s90, 0
    %s93 = sadd.s32 %s92, 1
    %s94 = scalar_select %p91, %s92, %s93
    %p97 = pneg %p91
    %p98 = scmp.eq.s32.totalorder %s18, 1
    %p99 = por %p97, %p98
    %p100 = scmp.ne.s32.totalorder %s92, %s95
    %p101 = scmp.eq.s32.totalorder %s18, 0
    %p102 = por %p100, %p101
    %p103 = scmp.ne.s32.totalorder %s92, %s95
    %p104 = scmp.eq.s32.totalorder %s23, 1
    %p105 = por %p103, %p104
    %p106 = scmp.ne.s32.totalorder %s95, %s96
    %p107 = scmp.eq.s32.totalorder %s23, 0
    %p108 = por %p106, %p107
    %p109 = scmp.ne.s32.totalorder %s95, %s96
    %p110 = scmp.eq.s32.totalorder %s24, 1
    %p111 = por %p109, %p110
    %p113 = scmp.ne.s32.totalorder %s96, %s112
    %p114 = scmp.eq.s32.totalorder %s24, 0
    %p115 = por %p113, %p114
    %s116 = ssub.s32 %s26, %s33
    %p117 = scmp.eq.s32.totalorder %s116, 0
    %s119 = sadd.s32 %s118, 1
    %s120 = scalar_select %p117, %s118, %s119
    %p123 = pneg %p117
    %p124 = scmp.eq.s32.totalorder %s18, 1
    %p125 = por %p123, %p124
    %p126 = scmp.ne.s32.totalorder %s118, %s121
    %p127 = scmp.eq.s32.totalorder %s18, 0
    %p128 = por %p126, %p127
    %p129 = scmp.ne.s32.totalorder %s118, %s121
    %p130 = scmp.eq.s32.totalorder %s23, 1
    %p131 = por %p129, %p130
    %p132 = scmp.ne.s32.totalorder %s121, %s122
    %p133 = scmp.eq.s32.totalorder %s23, 0
    %p134 = por %p132, %p133
    %p135 = scmp.ne.s32.totalorder %s121, %s122
    %p136 = scmp.eq.s32.totalorder %s24, 1
    %p137 = por %p135, %p136
    %p139 = scmp.ne.s32.totalorder %s122, %s138
    %p140 = scmp.eq.s32.totalorder %s24, 0
    %p141 = por %p139, %p140
    %s142 = ssub.s32 %s26, %s33
    %p143 = scmp.eq.s32.totalorder %s142, 0
    %s145 = sadd.s32 %s144, 1
    %s146 = scalar_select %p143, %s144, %s145
    %p149 = pneg %p143
    %p150 = scmp.eq.s32.totalorder %s18, 1
    %p151 = por %p149, %p150
    %p152 = scmp.ne.s32.totalorder %s144, %s147
    %p153 = scmp.eq.s32.totalorder %s18, 0
    %p154 = por %p152, %p153
    %p155 = scmp.ne.s32.totalorder %s144, %s147
    %p156 = scmp.eq.s32.totalorder %s23, 1
    %p157 = por %p155, %p156
    %p158 = scmp.ne.s32.totalorder %s147, %s148
    %p159 = scmp.eq.s32.totalorder %s23, 0
    %p160 = por %p158, %p159
    %p161 = scmp.ne.s32.totalorder %s147, %s148
    %p162 = scmp.eq.s32.totalorder %s24, 1
    %p163 = por %p161, %p162
    %p165 = scmp.ne.s32.totalorder %s148, %s164
    %p166 = scmp.eq.s32.totalorder %s24, 0
    %p167 = por %p165, %p166
    %s168 = ssub.s32 %s26, %s33
    %p169 = scmp.eq.s32.totalorder %s168, 0
    %s171 = sadd.s32 %s170, 1
    %s172 = scalar_select %p169, %s170, %s171
    %p175 = pneg %p169
    %p176 = scmp.eq.s32.totalorder %s18, 1
    %p177 = por %p175, %p176
    %p178 = scmp.ne.s32.totalorder %s170, %s173
    %p179 = scmp.eq.s32.totalorder %s18, 0
    %p180 = por %p178, %p179
    %p181 = scmp.ne.s32.totalorder %s170, %s173
    %p182 = scmp.eq.s32.totalorder %s23, 1
    %p183 = por %p181, %p182
    %p184 = scmp.ne.s32.totalorder %s173, %s174
    %p185 = scmp.eq.s32.totalorder %s23, 0
    %p186 = por %p184, %p185
    %p187 = scmp.ne.s32.totalorder %s173, %s174
    %p188 = scmp.eq.s32.totalorder %s24, 1
    %p189 = por %p187, %p188
    %p191 = scmp.ne.s32.totalorder %s174, %s190
    %p192 = scmp.eq.s32.totalorder %s24, 0
    %p193 = por %p191, %p192
    %s194 = ssub.s32 %s26, %s33
    %p195 = scmp.eq.s32.totalorder %s194, 0
    %s197 = sadd.s32 %s196, 1
    %s198 = scalar_select %p195, %s196, %s197
    %p201 = pneg %p195
    %p202 = scmp.eq.s32.totalorder %s18, 1
    %p203 = por %p201, %p202
    %p204 = scmp.ne.s32.totalorder %s196, %s199
    %p205 = scmp.eq.s32.totalorder %s18, 0
    %p206 = por %p204, %p205
    %p207 = scmp.ne.s32.totalorder %s196, %s199
    %p208 = scmp.eq.s32.totalorder %s23, 1
    %p209 = por %p207, %p208
    %p210 = scmp.ne.s32.totalorder %s199, %s200
    %p211 = scmp.eq.s32.totalorder %s23, 0
    %p212 = por %p210, %p211
    %p213 = scmp.ne.s32.totalorder %s199, %s200
    %p214 = scmp.eq.s32.totalorder %s24, 1
    %p215 = por %p213, %p214
    %p217 = scmp.ne.s32.totalorder %s200, %s216
    %p218 = scmp.eq.s32.totalorder %s24, 0
    %p219 = por %p217, %p218
    %s220 = ssub.s32 %s26, %s33
    %p221 = scmp.eq.s32.totalorder %s220, 0
    %s223 = sadd.s32 %s222, 1
    %s224 = scalar_select %p221, %s222, %s223
    %p227 = pneg %p221
    %p228 = scmp.eq.s32.totalorder %s18, 1
    %p229 = por %p227, %p228
    %p230 = scmp.ne.s32.totalorder %s222, %s225
    %p231 = scmp.eq.s32.totalorder %s18, 0
    %p232 = por %p230, %p231
    %p233 = scmp.ne.s32.totalorder %s222, %s225
    %p234 = scmp.eq.s32.totalorder %s23, 1
    %p235 = por %p233, %p234
    %p236 = scmp.ne.s32.totalorder %s225, %s226
    %p237 = scmp.eq.s32.totalorder %s23, 0
    %p238 = por %p236, %p237
    %p239 = scmp.ne.s32.totalorder %s225, %s226
    %p240 = scmp.eq.s32.totalorder %s24, 1
    %p241 = por %p239, %p240
    %p243 = scmp.ne.s32.totalorder %s226, %s242
    %p244 = scmp.eq.s32.totalorder %s24, 0
    %p245 = por %p243, %p244
    %s246 = ssub.s32 %s26, %s33
    %p247 = scmp.eq.s32.totalorder %s246, 0
    %s249 = sadd.s32 %s248, 1
    %s250 = scalar_select %p247, %s248, %s249
    %p253 = pneg %p247
    %p254 = scmp.eq.s32.totalorder %s18, 1
    %p255 = por %p253, %p254
    %p256 = scmp.ne.s32.totalorder %s248, %s251
    %p257 = scmp.eq.s32.totalorder %s18, 0
    %p258 = por %p256, %p257
    %p259 = scmp.ne.s32.totalorder %s248, %s251
    %p260 = scmp.eq.s32.totalorder %s23, 1
    %p261 = por %p259, %p260
    %p262 = scmp.ne.s32.totalorder %s251, %s252
    %p263 = scmp.eq.s32.totalorder %s23, 0
    %p264 = por %p262, %p263
    %p265 = scmp.ne.s32.totalorder %s251, %s252
    %p266 = scmp.eq.s32.totalorder %s24, 1
    %p267 = por %p265, %p266
    %p269 = scmp.ne.s32.totalorder %s252, %s268
    %p270 = scmp.eq.s32.totalorder %s24, 0
    %p271 = por %p269, %p270
    %s272 = ssub.s32 %s26, %s33
    %p273 = scmp.eq.s32.totalorder %s272, 0
    %s275 = sadd.s32 %s274, 1
    %s276 = scalar_select %p273, %s274, %s275
    %p279 = pneg %p273
    %p280 = scmp.eq.s32.totalorder %s18, 1
    %p281 = por %p279, %p280
    %p282 = scmp.ne.s32.totalorder %s274, %s277
    %p283 = scmp.eq.s32.totalorder %s18, 0
    %p284 = por %p282, %p283
    %p285 = scmp.ne.s32.totalorder %s274, %s277
    %p286 = scmp.eq.s32.totalorder %s23, 1
    %p287 = por %p285, %p286
    %p288 = scmp.ne.s32.totalorder %s277, %s278
    %p289 = scmp.eq.s32.totalorder %s23, 0
    %p290 = por %p288, %p289
    %p291 = scmp.ne.s32.totalorder %s277, %s278
    %p292 = scmp.eq.s32.totalorder %s24, 1
    %p293 = por %p291, %p292
    %p295 = scmp.ne.s32.totalorder %s278, %s294
    %p296 = scmp.eq.s32.totalorder %s24, 0
    %p297 = por %p295, %p296
    %s298 = ssub.s32 %s26, %s33
    %p299 = scmp.eq.s32.totalorder %s298, 0
    %s301 = sadd.s32 %s300, 1
    %s302 = scalar_select %p299, %s300, %s301
    %p305 = pneg %p299
    %p306 = scmp.eq.s32.totalorder %s18, 1
    %p307 = por %p305, %p306
    %p308 = scmp.ne.s32.totalorder %s300, %s303
    %p309 = scmp.eq.s32.totalorder %s18, 0
    %p310 = por %p308, %p309
    %p311 = scmp.ne.s32.totalorder %s300, %s303
    %p312 = scmp.eq.s32.totalorder %s23, 1
    %p313 = por %p311, %p312
    %p314 = scmp.ne.s32.totalorder %s303, %s304
    %p315 = scmp.eq.s32.totalorder %s23, 0
    %p316 = por %p314, %p315
    %p317 = scmp.ne.s32.totalorder %s303, %s304
    %p318 = scmp.eq.s32.totalorder %s24, 1
    %p319 = por %p317, %p318
    %p321 = scmp.ne.s32.totalorder %s304, %s320
    %p322 = scmp.eq.s32.totalorder %s24, 0
    %p323 = por %p321, %p322
    %s324 = ssub.s32 %s26, %s33
    %p325 = scmp.eq.s32.totalorder %s324, 0
    %s327 = sadd.s32 %s326, 1
    %s328 = scalar_select %p325, %s326, %s327
    %p331 = pneg %p325
    %p332 = scmp.eq.s32.totalorder %s18, 1
    %p333 = por %p331, %p332
    %p334 = scmp.ne.s32.totalorder %s326, %s329
    %p335 = scmp.eq.s32.totalorder %s18, 0
    %p336 = por %p334, %p335
    %p337 = scmp.ne.s32.totalorder %s326, %s329
    %p338 = scmp.eq.s32.totalorder %s23, 1
    %p339 = por %p337, %p338
    %p340 = scmp.ne.s32.totalorder %s329, %s330
    %p341 = scmp.eq.s32.totalorder %s23, 0
    %p342 = por %p340, %p341
    %p343 = scmp.ne.s32.totalorder %s329, %s330
    %p344 = scmp.eq.s32.totalorder %s24, 1
    %p345 = por %p343, %p344
    %p347 = scmp.ne.s32.totalorder %s330, %s346
    %p348 = scmp.eq.s32.totalorder %s24, 0
    %p349 = por %p347, %p348
    %s350 = ssub.s32 %s25, %s37
    %p351 = scmp.eq.s32.totalorder %s350, 0
    %s353 = sadd.s32 %s352, 1
    %s354 = scalar_select %p351, %s352, %s353
    %p357 = pneg %p351
    %p358 = scmp.eq.s32.totalorder %s18, 1
    %p359 = por %p357, %p358
    %p360 = scmp.ne.s32.totalorder %s352, %s355
    %p361 = scmp.eq.s32.totalorder %s18, 0
    %p362 = por %p360, %p361
    %p363 = scmp.ne.s32.totalorder %s352, %s355
    %p364 = scmp.eq.s32.totalorder %s23, 1
    %p365 = por %p363, %p364
    %p366 = scmp.ne.s32.totalorder %s355, %s356
    %p367 = scmp.eq.s32.totalorder %s23, 0
    %p368 = por %p366, %p367
    %p369 = scmp.ne.s32.totalorder %s355, %s356
    %p370 = scmp.eq.s32.totalorder %s24, 1
    %p371 = por %p369, %p370
    %p373 = scmp.ne.s32.totalorder %s356, %s372
    %p374 = scmp.eq.s32.totalorder %s24, 0
    %p375 = por %p373, %p374
    %p376 = scmp.le.s32.totalorder 1, %s18
    %p377 = scmp.lt.s32.totalorder %s18, 3
    %p378 = pnand %p376, %p377
    %p379 = pneg %p378
    // Predicated region
    $region9: #{transformer_encoder_parallel.1} parent=5 // pred_check
      _
    $region10: #{transformer_encoder_parallel.1} parent=5 // pred_check_branch
      %381 = sbr.rel (%p378) target = $region12
    $region11: #{transformer_encoder_parallel.1} parent=5 // pred_region
      %s382 = ssub.s32 %s18, 1
      // Predicated region
      $region13: #{transformer_encoder_parallel.1} parent=11 // pred_check
        %p383 = pneg %p56
      $region14: #{transformer_encoder_parallel.1} parent=11 // pred_check_branch
        %385 = sbr.rel (%p383) target = $region16
      $region15: #{transformer_encoder_parallel.1} parent=11 // pred_region
        %s386 = smul.u32 2, %s27
        %p387 = scmp.lt.s32.totalorder %s386, 1
        %s388 = scalar_select %p387, %s386, 1
        %s389 = smul.addr %s388, 8
        %s390 = scalar_lea.vmem %s0, %s389
        %s391 = smul.u32 2, %s27
      $region16: #{transformer_encoder_parallel.1} parent=11 // pred_fallthru
        _
    $region12: #{transformer_encoder_parallel.1} parent=5 // pred_fallthru
      _
    %p392 = scmp.lt.s32.totalorder %s18, 2
    // Predicated region
    $region17: #{transformer_encoder_parallel.1} parent=5 // pred_check
      %p393 = pneg %p392
    $region18: #{transformer_encoder_parallel.1} parent=5 // pred_check_branch
      %395 = sbr.rel (%p393) target = $region20
    $region19: #{transformer_encoder_parallel.1} parent=5 // pred_region
      // Predicated region
      $region21: #{transformer_encoder_parallel.1} parent=19 // pred_check
        %p396 = pneg %p76
      $region22: #{transformer_encoder_parallel.1} parent=19 // pred_check_branch
        %398 = sbr.rel (%p396) target = $region24
      $region23: #{transformer_encoder_parallel.1} parent=19 // pred_region
        %p399 = scmp.lt.s32.totalorder %s26, 1
        %s400 = scalar_select %p399, %s26, 1
        %s401 = scalar_lea.vmem %s1, %s400
      $region24: #{transformer_encoder_parallel.1} parent=19 // pred_fallthru
        _
      // Predicated region
      $region25: #{transformer_encoder_parallel.1} parent=19 // pred_check
        %p402 = pneg %p102
      $region26: #{transformer_encoder_parallel.1} parent=19 // pred_check_branch
        %404 = sbr.rel (%p402) target = $region28
      $region27: #{transformer_encoder_parallel.1} parent=19 // pred_region
        %p405 = scmp.lt.s32.totalorder %s26, 1
        %s406 = scalar_select %p405, %s26, 1
        %s407 = scalar_lea.vmem %s2, %s406
      $region28: #{transformer_encoder_parallel.1} parent=19 // pred_fallthru
        _
      // Predicated region
      $region29: #{transformer_encoder_parallel.1} parent=19 // pred_check
        %p408 = pneg %p128
      $region30: #{transformer_encoder_parallel.1} parent=19 // pred_check_branch
        %410 = sbr.rel (%p408) target = $region32
      $region31: #{transformer_encoder_parallel.1} parent=19 // pred_region
        %p411 = scmp.lt.s32.totalorder %s26, 1
        %s412 = scalar_select %p411, %s26, 1
        %s413 = smul.addr %s412, 4
        %s414 = smul.addr %s413, 4
        %s415 = scalar_lea.vmem %s3, %s414
      $region32: #{transformer_encoder_parallel.1} parent=19 // pred_fallthru
        _
      // Predicated region
      $region33: #{transformer_encoder_parallel.1} parent=19 // pred_check
        %p416 = pneg %p154
      $region34: #{transformer_encoder_parallel.1} parent=19 // pred_check_branch
        %418 = sbr.rel (%p416) target = $region36
      $region35: #{transformer_encoder_parallel.1} parent=19 // pred_region
        %p419 = scmp.lt.s32.totalorder %s26, 1
        %s420 = scalar_select %p419, %s26, 1
        %s421 = smul.addr %s420, 4
        %s422 = smul.addr %s421, 4
        %s423 = scalar_lea.vmem %s4, %s422
      $region36: #{transformer_encoder_parallel.1} parent=19 // pred_fallthru
        _
      // Predicated region
      $region37: #{transformer_encoder_parallel.1} parent=19 // pred_check
        %p424 = pneg %p180
      $region38: #{transformer_encoder_parallel.1} parent=19 // pred_check_branch
        %426 = sbr.rel (%p424) target = $region40
      $region39: #{transformer_encoder_parallel.1} parent=19 // pred_region
        %p427 = scmp.lt.s32.totalorder %s26, 1
        %s428 = scalar_select %p427, %s26, 1
        %s429 = scalar_lea.vmem %s5, %s428
      $region40: #{transformer_encoder_parallel.1} parent=19 // pred_fallthru
        _
      // Predicated region
      $region41: #{transformer_encoder_parallel.1} parent=19 // pred_check
        %p430 = pneg %p206
      $region42: #{transformer_encoder_parallel.1} parent=19 // pred_check_branch
        %432 = sbr.rel (%p430) target = $region44
      $region43: #{transformer_encoder_parallel.1} parent=19 // pred_region
        %p433 = scmp.lt.s32.totalorder %s26, 1
        %s434 = scalar_select %p433, %s26, 1
        %s435 = scalar_lea.vmem %s6, %s434
      $region44: #{transformer_encoder_parallel.1} parent=19 // pred_fallthru
        _
      // Predicated region
      $region45: #{transformer_encoder_parallel.1} parent=19 // pred_check
        %p436 = pneg %p232
      $region46: #{transformer_encoder_parallel.1} parent=19 // pred_check_branch
        %438 = sbr.rel (%p436) target = $region48
      $region47: #{transformer_encoder_parallel.1} parent=19 // pred_region
        %p439 = scmp.lt.s32.totalorder %s26, 1
        %s440 = scalar_select %p439, %s26, 1
        %s441 = scalar_lea.vmem %s7, %s440
      $region48: #{transformer_encoder_parallel.1} parent=19 // pred_fallthru
        _
      // Predicated region
      $region49: #{transformer_encoder_parallel.1} parent=19 // pred_check
        %p442 = pneg %p258
      $region50: #{transformer_encoder_parallel.1} parent=19 // pred_check_branch
        %444 = sbr.rel (%p442) target = $region52
      $region51: #{transformer_encoder_parallel.1} parent=19 // pred_region
        %p445 = scmp.lt.s32.totalorder %s26, 1
        %s446 = scalar_select %p445, %s26, 1
        %s447 = smul.addr %s446, 4
        %s448 = smul.addr %s447, 4
        %s449 = scalar_lea.vmem %s8, %s448
      $region52: #{transformer_encoder_parallel.1} parent=19 // pred_fallthru
        _
      // Predicated region
      $region53: #{transformer_encoder_parallel.1} parent=19 // pred_check
        %p450 = pneg %p284
      $region54: #{transformer_encoder_parallel.1} parent=19 // pred_check_branch
        %452 = sbr.rel (%p450) target = $region56
      $region55: #{transformer_encoder_parallel.1} parent=19 // pred_region
        %p453 = scmp.lt.s32.totalorder %s26, 1
        %s454 = scalar_select %p453, %s26, 1
        %s455 = scalar_lea.vmem %s9, %s454
      $region56: #{transformer_encoder_parallel.1} parent=19 // pred_fallthru
        _
      // Predicated region
      $region57: #{transformer_encoder_parallel.1} parent=19 // pred_check
        %p456 = pneg %p310
      $region58: #{transformer_encoder_parallel.1} parent=19 // pred_check_branch
        %458 = sbr.rel (%p456) target = $region60
      $region59: #{transformer_encoder_parallel.1} parent=19 // pred_region
        %p459 = scmp.lt.s32.totalorder %s26, 1
        %s460 = scalar_select %p459, %s26, 1
        %s461 = smul.addr %s460, 16
        %s462 = smul.addr %s461, 4
        %s463 = scalar_lea.vmem %s10, %s462
      $region60: #{transformer_encoder_parallel.1} parent=19 // pred_fallthru
        _
      // Predicated region
      $region61: #{transformer_encoder_parallel.1} parent=19 // pred_check
        %p464 = pneg %p336
      $region62: #{transformer_encoder_parallel.1} parent=19 // pred_check_branch
        %466 = sbr.rel (%p464) target = $region64
      $region63: #{transformer_encoder_parallel.1} parent=19 // pred_region
        %p467 = scmp.lt.s32.totalorder %s26, 1
        %s468 = scalar_select %p467, %s26, 1
        %s469 = scalar_lea.vmem %s11, %s468
      $region64: #{transformer_encoder_parallel.1} parent=19 // pred_fallthru
        _
    $region20: #{transformer_encoder_parallel.1} parent=5 // pred_fallthru
      _
    %p470 = scmp.le.s32.totalorder 1, %s18
    %p471 = scmp.lt.s32.totalorder %s18, 3
    %p472 = pnand %p470, %p471
    %p473 = pneg %p472
    // Predicated region
    $region65: #{transformer_encoder_parallel.1} parent=5 // pred_check
      _
    $region66: #{transformer_encoder_parallel.1} parent=5 // pred_check_branch
      %475 = sbr.rel (%p472) target = $region68
    $region67: #{transformer_encoder_parallel.1} parent=5 // pred_region
      %s476 = ssub.s32 %s18, 1
      %s477 = smul.u32 2, %s27
      %p478 = scmp.lt.s32.totalorder %s477, 1
      %s479 = scalar_select %p478, %s477, 1
      %s480 = smul.addr %s479, 8
      %s481 = scalar_lea.vmem %s0, %s480
      %p482 = pneg %p56
      %p483 = pneg %p53
      %p484 = scmp.lt.s32.totalorder %s28, 1
      %s485 = scalar_select %p484, %s28, 1
      %s486 = scalar_lea.vmem %s1, %s485
      %p487 = pneg %p82
      %p488 = pneg %p79
      %p489 = scmp.lt.s32.totalorder %s28, 1
      %s490 = scalar_select %p489, %s28, 1
      %s491 = scalar_lea.vmem %s2, %s490
      %p492 = pneg %p108
      %p493 = pneg %p105
      %p494 = scmp.lt.s32.totalorder %s28, 1
      %s495 = scalar_select %p494, %s28, 1
      %s496 = smul.addr %s495, 4
      %s497 = smul.addr %s496, 4
      %s498 = scalar_lea.vmem %s3, %s497
      %p499 = pneg %p134
      %p500 = pneg %p131
      %p501 = scmp.lt.s32.totalorder %s28, 1
      %s502 = scalar_select %p501, %s28, 1
      %s503 = smul.addr %s502, 4
      %s504 = smul.addr %s503, 4
      %s505 = scalar_lea.vmem %s4, %s504
      %p506 = pneg %p160
      %p507 = pneg %p157
      %p508 = scmp.lt.s32.totalorder %s28, 1
      %s509 = scalar_select %p508, %s28, 1
      %s510 = scalar_lea.vmem %s5, %s509
      %p511 = pneg %p186
      %p512 = pneg %p183
      %p513 = scmp.lt.s32.totalorder %s28, 1
      %s514 = scalar_select %p513, %s28, 1
      %s515 = scalar_lea.vmem %s6, %s514
      %p516 = pneg %p212
      %p517 = pneg %p209
      %p518 = scmp.lt.s32.totalorder %s28, 1
      %s519 = scalar_select %p518, %s28, 1
      %s520 = scalar_lea.vmem %s7, %s519
      %p521 = pneg %p238
      %p522 = pneg %p235
      %p523 = scmp.lt.s32.totalorder %s28, 1
      %s524 = scalar_select %p523, %s28, 1
      %s525 = smul.addr %s524, 4
      %s526 = smul.addr %s525, 4
      %s527 = scalar_lea.vmem %s8, %s526
      %p528 = pneg %p264
      %p529 = pneg %p261
      %p530 = scmp.lt.s32.totalorder %s28, 1
      %s531 = scalar_select %p530, %s28, 1
      %s532 = scalar_lea.vmem %s9, %s531
      %p533 = pneg %p290
      %p534 = pneg %p287
      %p535 = scmp.lt.s32.totalorder %s28, 1
      %s536 = scalar_select %p535, %s28, 1
      %s537 = smul.addr %s536, 16
      %s538 = smul.addr %s537, 4
      %s539 = scalar_lea.vmem %s10, %s538
      %p540 = pneg %p316
      %p541 = pneg %p313
      %p542 = scmp.lt.s32.totalorder %s28, 1
      %s543 = scalar_select %p542, %s28, 1
      %s544 = scalar_lea.vmem %s11, %s543
      %p545 = pneg %p342
      %p546 = pneg %p339
      %p547 = pneg %p368
      %p548 = pneg %p365
      %s549 = smul.u32 2, %s27
      %p550 = scmp.lt.s32.totalorder %s549, 1
      %s551 = scalar_select %p550, %s549, 1
      %s552 = smul.addr %s551, 8
      %s553 = scalar_lea.vmem %s12, %s552
      %s554 = smul.u32 2, %s27
      %p555 = scmp.lt.s32.totalorder %s554, 1
      %s556 = scalar_select %p555, %s554, 1
      %s557 = smul.addr %s556, 8
      %s558 = scalar_lea.vmem %s0, %s557
      %s559 = smul.u32 2, %s27
      %p560 = scmp.lt.s32.totalorder %s28, 1
      %s561 = scalar_select %p560, %s28, 1
      %s562 = scalar_lea.vmem %s1, %s561
      %p563 = scmp.lt.s32.totalorder %s28, 1
      %s564 = scalar_select %p563, %s28, 1
      %s565 = scalar_lea.vmem %s2, %s564
      %p566 = scmp.lt.s32.totalorder %s28, 1
      %s567 = scalar_select %p566, %s28, 1
      %s568 = smul.addr %s567, 4
      %s569 = smul.addr %s568, 4
      %s570 = scalar_lea.vmem %s3, %s569
      %p571 = scmp.lt.s32.totalorder %s28, 1
      %s572 = scalar_select %p571, %s28, 1
      %s573 = smul.addr %s572, 4
      %s574 = smul.addr %s573, 4
      %s575 = scalar_lea.vmem %s4, %s574
      %p576 = scmp.lt.s32.totalorder %s28, 1
      %s577 = scalar_select %p576, %s28, 1
      %s578 = scalar_lea.vmem %s5, %s577
      %p579 = scmp.lt.s32.totalorder %s28, 1
      %s580 = scalar_select %p579, %s28, 1
      %s581 = scalar_lea.vmem %s6, %s580
      %p582 = scmp.lt.s32.totalorder %s28, 1
      %s583 = scalar_select %p582, %s28, 1
      %s584 = scalar_lea.vmem %s7, %s583
      %p585 = scmp.lt.s32.totalorder %s28, 1
      %s586 = scalar_select %p585, %s28, 1
      %s587 = smul.addr %s586, 4
      %s588 = smul.addr %s587, 4
      %s589 = scalar_lea.vmem %s8, %s588
      %p590 = scmp.lt.s32.totalorder %s28, 1
      %s591 = scalar_select %p590, %s28, 1
      %s592 = scalar_lea.vmem %s9, %s591
      %p593 = scmp.lt.s32.totalorder %s28, 1
      %s594 = scalar_select %p593, %s28, 1
      %s595 = smul.addr %s594, 16
      %s596 = smul.addr %s595, 4
      %s597 = scalar_lea.vmem %s10, %s596
      %p598 = scmp.lt.s32.totalorder %s28, 1
      %s599 = scalar_select %p598, %s28, 1
      %s600 = scalar_lea.vmem %s11, %s599
      %s601 = smul.u32 2, %s27
      %p602 = scmp.lt.s32.totalorder %s601, 1
      %s603 = scalar_select %p602, %s601, 1
      %s604 = smul.addr %s603, 8
      %s605 = scalar_lea.vmem %s12, %s604
      %s606 = smul.u32 2, %s27
      %p608 = scmp.eq.s32.totalorder %s28, 0
      // Predicated region
      $region69: #{transformer_encoder_parallel.1} parent=67 // pred_check
        %p609 = pneg %p608
      $region70: #{transformer_encoder_parallel.1} parent=67 // pred_check_branch
        %611 = sbr.rel (%p609) target = $region72
      $region71: #{transformer_encoder_parallel.1} parent=67 // pred_region
        %v612 = vld [vmem:[%s558] sm:$0xff]
        %v613 = vld [vmem:[%s558 + $0x8] sm:$0xff]
        %vm614 = vcmask 261120
        %615 = vst.msk [vmem:[%s605] sm:$0xff] %vm614, %v612
        %616 = vst.msk [vmem:[%s605 + $0x8] sm:$0xff] %vm614, %v613
      $region72: #{transformer_encoder_parallel.1} parent=67 // pred_fallthru
        _
      %v617 = vld [vmem:[%s605] sm:$0xff]
      %v618 = vld [vmem:[%s605 + $0x8] sm:$0xff]
      %v619 = vld [vmem:[%s562] sm:$0x1]
      %v620 = vld [vmem:[%s565] sm:$0x1]
      %vm621 = vcmask 261120
      %v622 = vsel %vm621, %v617, 0.0
      %623 = vadd.xlane.f32.xlu0 %v622
      %v624 = vpop.xlane.xlu0 %623
      %v625 = vsel %vm621, %v618, 0.0
      %626 = vadd.xlane.f32.xlu0 %v625
      %v627 = vpop.xlane.xlu0 %626
      %v628 = vrcp.pop 32.0
      %v629 = vmul.f32 %v624, %v628
      %v630 = vmul.f32 %v627, %v628
      %v631 = vsub.f32 %v617, %v629
      %v632 = vsub.f32 %v618, %v630
      %v633 = vmul.f32 %v631, %v631
      %v634 = vmul.f32 %v632, %v632
      %v635 = vsel %vm621, %v633, 0.0
      %636 = vadd.xlane.f32.xlu0 %v635
      %v637 = vpop.xlane.xlu0 %636
      %v638 = vsel %vm621, %v634, 0.0
      %639 = vadd.xlane.f32.xlu0 %v638
      %v640 = vpop.xlane.xlu0 %639
      %v641 = vmul.f32 %v637, %v628
      %v642 = vmul.f32 %v640, %v628
      %v643 = vadd.f32 %v641, 1e-05
      %v644 = vadd.f32 %v642, 1e-05
      %v645 = vrsqrt.pop %v643
      %v646 = vrsqrt.pop %v644
      %v647 = vmul.f32 %v631, %v645
      %v648 = vmul.f32 %v632, %v646
      %v650 = vlaneseq
      %v651 = vshrl.u32 %v650, 7
      %v652 = vsub.s32 0, %v651
      %v653 = vrot.slane %v619, %v652
      %v655 = vmul.f32 %v647, %v653
      %v656 = vmul.f32 %v648, %v653
      %v658 = vlaneseq
      %v659 = vshrl.u32 %v658, 7
      %v660 = vsub.s32 0, %v659
      %v661 = vrot.slane %v620, %v660
      %v663 = vadd.f32 %v655, %v661
      %v664 = vadd.f32 %v656, %v661
      %v665 = vpack.c.bf16 %v664, %v663
      %v666 = vld [vmem:[%s570] sm:$0xf]
      %v667 = vld [vmem:[%s570 + $0x4] sm:$0xf]
      %v668 = vld [vmem:[%s570 + $0x8] sm:$0xf]
      %v669 = vld [vmem:[%s570 + $0xc] sm:$0xf]
      %v674 = vunpack.c.l.b16 %v666
      %v675 = vunpack.c.l.b16 %v667
      %v676 = vunpack.c.l.b16 %v668
      %v677 = vunpack.c.l.b16 %v669
      %v678 = vpack.c.b16 %v675, %v674
      %v679 = vpack.c.b16 %v677, %v676
      %v683 = vsel %vm621, %v665, 0
      %685 = vmatprep.subr.bf16.mxu0 0
      %686 = vmatpush1.bf16.msra.mxu0 %v678
      %687 = vmatprep.subr.bf16.mxu0 0
      %688 = vmatpush1.bf16.msra.mxu0 %v679
      %689 = vmatprep.subr.bf16.mxu0 0
      %690 = vmatpush1.bf16.msra.mxu0 0
      %691 = vmatprep.subr.bf16.mxu0 0
      %692 = vmatpush1.bf16.msra.mxu0 0
      %693 = vmatprep.subr.bf16.mxu0 0
      %694 = vmatpush1.bf16.msra.mxu0 0
      %695 = vmatprep.subr.bf16.mxu0 0
      %696 = vmatpush1.bf16.msra.mxu0 0
      %697 = vmatprep.subr.bf16.mxu0 0
      %698 = vmatpush1.bf16.msra.mxu0 0
      %699 = vmatprep.subr.bf16.mxu0 0
      %700 = vmatpush1.bf16.msra.mxu0 0
      %701 = vmatprep.subr.bf16.mxu0 0
      %702 = vmatpush1.bf16.msra.mxu0 0
      %703 = vmatprep.subr.bf16.mxu0 0
      %704 = vmatpush1.bf16.msra.mxu0 0
      %705 = vmatprep.subr.bf16.mxu0 0
      %706 = vmatpush1.bf16.msra.mxu0 0
      %707 = vmatprep.subr.bf16.mxu0 0
      %708 = vmatpush1.bf16.msra.mxu0 0
      %709 = vmatprep.subr.bf16.mxu0 0
      %710 = vmatpush1.bf16.msra.mxu0 0
      %711 = vmatprep.subr.bf16.mxu0 0
      %712 = vmatpush1.bf16.msra.mxu0 0
      %713 = vmatprep.subr.bf16.mxu0 0
      %714 = vmatpush1.bf16.msra.mxu0 0
      %715 = vmatprep.subr.bf16.mxu0 0
      %716 = vmatpush1.bf16.msra.mxu0 0
      %717 = vmatprep.mubr.bf16.mxu0 0
      %718 = vmatmul.mubr.bf16.gmra.mrb[0].mxu0 %v683
      %v719 = vpop.f32.mrb[0].mxu0
      %v720 = vadd.f32 0.0, %v719
      %v721 = vpop.f32.mrb[0].mxu0
      %v722 = vpop.f32.mrb[0].mxu0
      %v723 = vadd.f32 0.0, %v722
      %v724 = vpop.f32.mrb[0].mxu0
      %725 = vdwg.mxu0
      %728 = vrot.lane.b32.xlu0 %v720, 104
      %v729 = vpop.permute.xlu0 %728
      %730 = vrot.lane.b32.xlu0 %v723, 104
      %v731 = vpop.permute.xlu0 %730
      %734 = vrot.lane.b32.xlu0 %v720, 80
      %v735 = vpop.permute.xlu0 %734
      %736 = vrot.lane.b32.xlu0 %v723, 80
      %v737 = vpop.permute.xlu0 %736
      %740 = vrot.lane.b32.xlu0 %v720, 56
      %v741 = vpop.permute.xlu0 %740
      %742 = vrot.lane.b32.xlu0 %v723, 56
      %v743 = vpop.permute.xlu0 %742
      %v746 = vpack.c.bf16 %v720, %v720
      %v747 = vpack.c.bf16 %v723, %v723
      %v748 = vpack.c.bf16 %v729, %v729
      %v749 = vpack.c.bf16 %v731, %v731
      %v750 = vpack.c.bf16 %v735, %v735
      %v751 = vpack.c.bf16 %v737, %v737
      %v752 = vpack.c.bf16 %v741, %v741
      %v753 = vpack.c.bf16 %v743, %v743
      %755 = vrot.lane.b32.xlu0 %v746, 120
      %v756 = vpop.permute.xlu0 %755
      %vm757 = vcmask 64512
      %v759 = vsel %vm757, %v746, 0
      %v762 = vsel %vm757, %v756, 0
      %764 = vmatprep.subr.bf16.mxu0 0
      %765 = vmatpush1.bf16.xpose.msra.mxu0 %v762
      %766 = vmatprep.subr.bf16.mxu0 0
      %767 = vmatpush1.bf16.xpose.msra.mxu0 0
      %768 = vmatprep.subr.bf16.mxu0 0
      %769 = vmatpush1.bf16.xpose.msra.mxu0 0
      %770 = vmatprep.subr.bf16.mxu0 0
      %771 = vmatpush1.bf16.xpose.msra.mxu0 0
      %772 = vmatprep.subr.bf16.mxu0 0
      %773 = vmatpush1.bf16.xpose.msra.mxu0 0
      %774 = vmatprep.subr.bf16.mxu0 0
      %775 = vmatpush1.bf16.xpose.msra.mxu0 0
      %776 = vmatprep.subr.bf16.mxu0 0
      %777 = vmatpush1.bf16.xpose.msra.mxu0 0
      %778 = vmatprep.subr.bf16.mxu0 0
      %779 = vmatpush1.bf16.xpose.msra.mxu0 0
      %780 = vmatprep.subr.bf16.mxu0 0
      %781 = vmatpush1.bf16.xpose.msra.mxu0 0
      %782 = vmatprep.subr.bf16.mxu0 0
      %783 = vmatpush1.bf16.xpose.msra.mxu0 0
      %784 = vmatprep.subr.bf16.mxu0 0
      %785 = vmatpush1.bf16.xpose.msra.mxu0 0
      %786 = vmatprep.subr.bf16.mxu0 0
      %787 = vmatpush1.bf16.xpose.msra.mxu0 0
      %788 = vmatprep.subr.bf16.mxu0 0
      %789 = vmatpush1.bf16.xpose.msra.mxu0 0
      %790 = vmatprep.subr.bf16.mxu0 0
      %791 = vmatpush1.bf16.xpose.msra.mxu0 0
      %792 = vmatprep.subr.bf16.mxu0 0
      %793 = vmatpush1.bf16.xpose.msra.mxu0 0
      %794 = vmatprep.subr.bf16.mxu0 0
      %795 = vmatpush1.bf16.xpose.msra.mxu0 0
      %796 = vmatprep.mubr.bf16.mxu0 0
      %797 = vmatmul.mubr.bf16.gmra.mrb[0].mxu0 %v759
      %v798 = vpop.f32.mrb[0].mxu0
      %v799 = vadd.f32 0.0, %v798
      %v800 = vpop.f32.mrb[0].mxu0
      %v801 = vpop.f32.mrb[0].mxu0
      %v802 = vpop.f32.mrb[0].mxu0
      %803 = vdwg.mxu0
      %805 = vrot.lane.b32.xlu0 %v747, 120
      %v806 = vpop.permute.xlu0 %805
      %v808 = vsel %vm757, %v747, 0
      %v811 = vsel %vm757, %v806, 0
      %813 = vmatprep.subr.bf16.mxu0 0
      %814 = vmatpush1.bf16.xpose.msra.mxu0 %v811
      %815 = vmatprep.subr.bf16.mxu0 0
      %816 = vmatpush1.bf16.xpose.msra.mxu0 0
      %817 = vmatprep.subr.bf16.mxu0 0
      %818 = vmatpush1.bf16.xpose.msra.mxu0 0
      %819 = vmatprep.subr.bf16.mxu0 0
      %820 = vmatpush1.bf16.xpose.msra.mxu0 0
      %821 = vmatprep.subr.bf16.mxu0 0
      %822 = vmatpush1.bf16.xpose.msra.mxu0 0
      %823 = vmatprep.subr.bf16.mxu0 0
      %824 = vmatpush1.bf16.xpose.msra.mxu0 0
      %825 = vmatprep.subr.bf16.mxu0 0
      %826 = vmatpush1.bf16.xpose.msra.mxu0 0
      %827 = vmatprep.subr.bf16.mxu0 0
      %828 = vmatpush1.bf16.xpose.msra.mxu0 0
      %829 = vmatprep.subr.bf16.mxu0 0
      %830 = vmatpush1.bf16.xpose.msra.mxu0 0
      %831 = vmatprep.subr.bf16.mxu0 0
      %832 = vmatpush1.bf16.xpose.msra.mxu0 0
      %833 = vmatprep.subr.bf16.mxu0 0
      %834 = vmatpush1.bf16.xpose.msra.mxu0 0
      %835 = vmatprep.subr.bf16.mxu0 0
      %836 = vmatpush1.bf16.xpose.msra.mxu0 0
      %837 = vmatprep.subr.bf16.mxu0 0
      %838 = vmatpush1.bf16.xpose.msra.mxu0 0
      %839 = vmatprep.subr.bf16.mxu0 0
      %840 = vmatpush1.bf16.xpose.msra.mxu0 0
      %841 = vmatprep.subr.bf16.mxu0 0
      %842 = vmatpush1.bf16.xpose.msra.mxu0 0
      %843 = vmatprep.subr.bf16.mxu0 0
      %844 = vmatpush1.bf16.xpose.msra.mxu0 0
      %845 = vmatprep.mubr.bf16.mxu0 0
      %846 = vmatmul.mubr.bf16.gmra.mrb[0].mxu0 %v808
      %v847 = vpop.f32.mrb[0].mxu0
      %v848 = vadd.f32 0.0, %v847
      %v849 = vpop.f32.mrb[0].mxu0
      %v850 = vpop.f32.mrb[0].mxu0
      %v851 = vpop.f32.mrb[0].mxu0
      %852 = vdwg.mxu0
      %854 = vrot.lane.b32.xlu0 %v748, 120
      %v855 = vpop.permute.xlu0 %854
      %v857 = vsel %vm757, %v748, 0
      %v860 = vsel %vm757, %v855, 0
      %862 = vmatprep.subr.bf16.mxu0 0
      %863 = vmatpush1.bf16.xpose.msra.mxu0 %v860
      %864 = vmatprep.subr.bf16.mxu0 0
      %865 = vmatpush1.bf16.xpose.msra.mxu0 0
      %866 = vmatprep.subr.bf16.mxu0 0
      %867 = vmatpush1.bf16.xpose.msra.mxu0 0
      %868 = vmatprep.subr.bf16.mxu0 0
      %869 = vmatpush1.bf16.xpose.msra.mxu0 0
      %870 = vmatprep.subr.bf16.mxu0 0
      %871 = vmatpush1.bf16.xpose.msra.mxu0 0
      %872 = vmatprep.subr.bf16.mxu0 0
      %873 = vmatpush1.bf16.xpose.msra.mxu0 0
      %874 = vmatprep.subr.bf16.mxu0 0
      %875 = vmatpush1.bf16.xpose.msra.mxu0 0
      %876 = vmatprep.subr.bf16.mxu0 0
      %877 = vmatpush1.bf16.xpose.msra.mxu0 0
      %878 = vmatprep.subr.bf16.mxu0 0
      %879 = vmatpush1.bf16.xpose.msra.mxu0 0
      %880 = vmatprep.subr.bf16.mxu0 0
      %881 = vmatpush1.bf16.xpose.msra.mxu0 0
      %882 = vmatprep.subr.bf16.mxu0 0
      %883 = vmatpush1.bf16.xpose.msra.mxu0 0
      %884 = vmatprep.subr.bf16.mxu0 0
      %885 = vmatpush1.bf16.xpose.msra.mxu0 0
      %886 = vmatprep.subr.bf16.mxu0 0
      %887 = vmatpush1.bf16.xpose.msra.mxu0 0
      %888 = vmatprep.subr.bf16.mxu0 0
      %889 = vmatpush1.bf16.xpose.msra.mxu0 0
      %890 = vmatprep.subr.bf16.mxu0 0
      %891 = vmatpush1.bf16.xpose.msra.mxu0 0
      %892 = vmatprep.subr.bf16.mxu0 0
      %893 = vmatpush1.bf16.xpose.msra.mxu0 0
      %894 = vmatprep.mubr.bf16.mxu0 0
      %895 = vmatmul.mubr.bf16.gmra.mrb[0].mxu0 %v857
      %v896 = vpop.f32.mrb[0].mxu0
      %v897 = vadd.f32 0.0, %v896
      %v898 = vpop.f32.mrb[0].mxu0
      %v899 = vpop.f32.mrb[0].mxu0
      %v900 = vpop.f32.mrb[0].mxu0
      %901 = vdwg.mxu0
      %903 = vrot.lane.b32.xlu0 %v749, 120
      %v904 = vpop.permute.xlu0 %903
      %v906 = vsel %vm757, %v749, 0
      %v909 = vsel %vm757, %v904, 0
      %911 = vmatprep.subr.bf16.mxu0 0
      %912 = vmatpush1.bf16.xpose.msra.mxu0 %v909
      %913 = vmatprep.subr.bf16.mxu0 0
      %914 = vmatpush1.bf16.xpose.msra.mxu0 0
      %915 = vmatprep.subr.bf16.mxu0 0
      %916 = vmatpush1.bf16.xpose.msra.mxu0 0
      %917 = vmatprep.subr.bf16.mxu0 0
      %918 = vmatpush1.bf16.xpose.msra.mxu0 0
      %919 = vmatprep.subr.bf16.mxu0 0
      %920 = vmatpush1.bf16.xpose.msra.mxu0 0
      %921 = vmatprep.subr.bf16.mxu0 0
      %922 = vmatpush1.bf16.xpose.msra.mxu0 0
      %923 = vmatprep.subr.bf16.mxu0 0
      %924 = vmatpush1.bf16.xpose.msra.mxu0 0
      %925 = vmatprep.subr.bf16.mxu0 0
      %926 = vmatpush1.bf16.xpose.msra.mxu0 0
      %927 = vmatprep.subr.bf16.mxu0 0
      %928 = vmatpush1.bf16.xpose.msra.mxu0 0
      %929 = vmatprep.subr.bf16.mxu0 0
      %930 = vmatpush1.bf16.xpose.msra.mxu0 0
      %931 = vmatprep.subr.bf16.mxu0 0
      %932 = vmatpush1.bf16.xpose.msra.mxu0 0
      %933 = vmatprep.subr.bf16.mxu0 0
      %934 = vmatpush1.bf16.xpose.msra.mxu0 0
      %935 = vmatprep.subr.bf16.mxu0 0
      %936 = vmatpush1.bf16.xpose.msra.mxu0 0
      %937 = vmatprep.subr.bf16.mxu0 0
      %938 = vmatpush1.bf16.xpose.msra.mxu0 0
      %939 = vmatprep.subr.bf16.mxu0 0
      %940 = vmatpush1.bf16.xpose.msra.mxu0 0
      %941 = vmatprep.subr.bf16.mxu0 0
      %942 = vmatpush1.bf16.xpose.msra.mxu0 0
      %943 = vmatprep.mubr.bf16.mxu0 0
      %944 = vmatmul.mubr.bf16.gmra.mrb[0].mxu0 %v906
      %v945 = vpop.f32.mrb[0].mxu0
      %v946 = vadd.f32 0.0, %v945
      %v947 = vpop.f32.mrb[0].mxu0
      %v948 = vpop.f32.mrb[0].mxu0
      %v949 = vpop.f32.mrb[0].mxu0
      %950 = vdwg.mxu0
      %952 = vrot.lane.b32.xlu0 %v750, 120
      %v953 = vpop.permute.xlu0 %952
      %v955 = vsel %vm757, %v750, 0
      %v958 = vsel %vm757, %v953, 0
      %960 = vmatprep.subr.bf16.mxu0 0
      %961 = vmatpush1.bf16.xpose.msra.mxu0 %v958
      %962 = vmatprep.subr.bf16.mxu0 0
      %963 = vmatpush1.bf16.xpose.msra.mxu0 0
      %964 = vmatprep.subr.bf16.mxu0 0
      %965 = vmatpush1.bf16.xpose.msra.mxu0 0
      %966 = vmatprep.subr.bf16.mxu0 0
      %967 = vmatpush1.bf16.xpose.msra.mxu0 0
      %968 = vmatprep.subr.bf16.mxu0 0
      %969 = vmatpush1.bf16.xpose.msra.mxu0 0
      %970 = vmatprep.subr.bf16.mxu0 0
      %971 = vmatpush1.bf16.xpose.msra.mxu0 0
      %972 = vmatprep.subr.bf16.mxu0 0
      %973 = vmatpush1.bf16.xpose.msra.mxu0 0
      %974 = vmatprep.subr.bf16.mxu0 0
      %975 = vmatpush1.bf16.xpose.msra.mxu0 0
      %976 = vmatprep.subr.bf16.mxu0 0
      %977 = vmatpush1.bf16.xpose.msra.mxu0 0
      %978 = vmatprep.subr.bf16.mxu0 0
      %979 = vmatpush1.bf16.xpose.msra.mxu0 0
      %980 = vmatprep.subr.bf16.mxu0 0
      %981 = vmatpush1.bf16.xpose.msra.mxu0 0
      %982 = vmatprep.subr.bf16.mxu0 0
      %983 = vmatpush1.bf16.xpose.msra.mxu0 0
      %984 = vmatprep.subr.bf16.mxu0 0
      %985 = vmatpush1.bf16.xpose.msra.mxu0 0
      %986 = vmatprep.subr.bf16.mxu0 0
      %987 = vmatpush1.bf16.xpose.msra.mxu0 0
      %988 = vmatprep.subr.bf16.mxu0 0
      %989 = vmatpush1.bf16.xpose.msra.mxu0 0
      %990 = vmatprep.subr.bf16.mxu0 0
      %991 = vmatpush1.bf16.xpose.msra.mxu0 0
      %992 = vmatprep.mubr.bf16.mxu0 0
      %993 = vmatmul.mubr.bf16.gmra.mrb[0].mxu0 %v955
      %v994 = vpop.f32.mrb[0].mxu0
      %v995 = vadd.f32 0.0, %v994
      %v996 = vpop.f32.mrb[0].mxu0
      %v997 = vpop.f32.mrb[0].mxu0
      %v998 = vpop.f32.mrb[0].mxu0
      %999 = vdwg.mxu0
      %1001 = vrot.lane.b32.xlu0 %v751, 120
      %v1002 = vpop.permute.xlu0 %1001
      %v1004 = vsel %vm757, %v751, 0
      %v1007 = vsel %vm757, %v1002, 0
      %1009 = vmatprep.subr.bf16.mxu0 0
      %1010 = vmatpush1.bf16.xpose.msra.mxu0 %v1007
      %1011 = vmatprep.subr.bf16.mxu0 0
      %1012 = vmatpush1.bf16.xpose.msra.mxu0 0
      %1013 = vmatprep.subr.bf16.mxu0 0
      %1014 = vmatpush1.bf16.xpose.msra.mxu0 0
      %1015 = vmatprep.subr.bf16.mxu0 0
      %1016 = vmatpush1.bf16.xpose.msra.mxu0 0
      %1017 = vmatprep.subr.bf16.mxu0 0
      %1018 = vmatpush1.bf16.xpose.msra.mxu0 0
      %1019 = vmatprep.subr.bf16.mxu0 0
      %1020 = vmatpush1.bf16.xpose.msra.mxu0 0
      %1021 = vmatprep.subr.bf16.mxu0 0
      %1022 = vmatpush1.bf16.xpose.msra.mxu0 0
      %1023 = vmatprep.subr.bf16.mxu0 0
      %1024 = vmatpush1.bf16.xpose.msra.mxu0 0
      %1025 = vmatprep.subr.bf16.mxu0 0
      %1026 = vmatpush1.bf16.xpose.msra.mxu0 0
      %1027 = vmatprep.subr.bf16.mxu0 0
      %1028 = vmatpush1.bf16.xpose.msra.mxu0 0
      %1029 = vmatprep.subr.bf16.mxu0 0
      %1030 = vmatpush1.bf16.xpose.msra.mxu0 0
      %1031 = vmatprep.subr.bf16.mxu0 0
      %1032 = vmatpush1.bf16.xpose.msra.mxu0 0
      %1033 = vmatprep.subr.bf16.mxu0 0
      %1034 = vmatpush1.bf16.xpose.msra.mxu0 0
      %1035 = vmatprep.subr.bf16.mxu0 0
      %1036 = vmatpush1.bf16.xpose.msra.mxu0 0
      %1037 = vmatprep.subr.bf16.mxu0 0
      %1038 = vmatpush1.bf16.xpose.msra.mxu0 0
      %1039 = vmatprep.subr.bf16.mxu0 0
      %1040 = vmatpush1.bf16.xpose.msra.mxu0 0
      %1041 = vmatprep.mubr.bf16.mxu0 0
      %1042 = vmatmul.mubr.bf16.gmra.mrb[0].mxu0 %v1004
      %v1043 = vpop.f32.mrb[0].mxu0
      %v1044 = vadd.f32 0.0, %v1043
      %v1045 = vpop.f32.mrb[0].mxu0
      %v1046 = vpop.f32.mrb[0].mxu0
      %v1047 = vpop.f32.mrb[0].mxu0
      %1048 = vdwg.mxu0
      %1050 = vrot.lane.b32.xlu0 %v752, 120
      %v1051 = vpop.permute.xlu0 %1050
      %v1053 = vsel %vm757, %v752, 0
      %v1056 = vsel %vm757, %v1051, 0
      %1058 = vmatprep.subr.bf16.mxu0 0
      %1059 = vmatpush1.bf16.xpose.msra.mxu0 %v1056
      %1060 = vmatprep.subr.bf16.mxu0 0
      %1061 = vmatpush1.bf16.xpose.msra.mxu0 0
      %1062 = vmatprep.subr.bf16.mxu0 0
      %1063 = vmatpush1.bf16.xpose.msra.mxu0 0
      %1064 = vmatprep.subr.bf16.mxu0 0
      %1065 = vmatpush1.bf16.xpose.msra.mxu0 0
      %1066 = vmatprep.subr.bf16.mxu0 0
      %1067 = vmatpush1.bf16.xpose.msra.mxu0 0
      %1068 = vmatprep.subr.bf16.mxu0 0
      %1069 = vmatpush1.bf16.xpose.msra.mxu0 0
      %1070 = vmatprep.subr.bf16.mxu0 0
      %1071 = vmatpush1.bf16.xpose.msra.mxu0 0
      %1072 = vmatprep.subr.bf16.mxu0 0
      %1073 = vmatpush1.bf16.xpose.msra.mxu0 0
      %1074 = vmatprep.subr.bf16.mxu0 0
      %1075 = vmatpush1.bf16.xpose.msra.mxu0 0
      %1076 = vmatprep.subr.bf16.mxu0 0
      %1077 = vmatpush1.bf16.xpose.msra.mxu0 0
      %1078 = vmatprep.subr.bf16.mxu0 0
      %1079 = vmatpush1.bf16.xpose.msra.mxu0 0
      %1080 = vmatprep.subr.bf16.mxu0 0
      %1081 = vmatpush1.bf16.xpose.msra.mxu0 0
      %1082 = vmatprep.subr.bf16.mxu0 0
      %1083 = vmatpush1.bf16.xpose.msra.mxu0 0
      %1084 = vmatprep.subr.bf16.mxu0 0
      %1085 = vmatpush1.bf16.xpose.msra.mxu0 0
      %1086 = vmatprep.subr.bf16.mxu0 0
      %1087 = vmatpush1.bf16.xpose.msra.mxu0 0
      %1088 = vmatprep.subr.bf16.mxu0 0
      %1089 = vmatpush1.bf16.xpose.msra.mxu0 0
      %1090 = vmatprep.mubr.bf16.mxu0 0
      %1091 = vmatmul.mubr.bf16.gmra.mrb[0].mxu0 %v1053
      %v1092 = vpop.f32.mrb[0].mxu0
      %v1093 = vadd.f32 0.0, %v1092
      %v1094 = vpop.f32.mrb[0].mxu0
      %v1095 = vpop.f32.mrb[0].mxu0
      %v1096 = vpop.f32.mrb[0].mxu0
      %1097 = vdwg.mxu0
      %1099 = vrot.lane.b32.xlu0 %v753, 120
      %v1100 = vpop.permute.xlu0 %1099
      %v1102 = vsel %vm757, %v753, 0
      %v1105 = vsel %vm757, %v1100, 0
      %1107 = vmatprep.subr.bf16.mxu0 0
      %1108 = vmatpush1.bf16.xpose.msra.mxu0 %v1105
      %1109 = vmatprep.subr.bf16.mxu0 0
      %1110 = vmatpush1.bf16.xpose.msra.mxu0 0
      %1111 = vmatprep.subr.bf16.mxu0 0
      %1112 = vmatpush1.bf16.xpose.msra.mxu0 0
      %1113 = vmatprep.subr.bf16.mxu0 0
      %1114 = vmatpush1.bf16.xpose.msra.mxu0 0
      %1115 = vmatprep.subr.bf16.mxu0 0
      %1116 = vmatpush1.bf16.xpose.msra.mxu0 0
      %1117 = vmatprep.subr.bf16.mxu0 0
      %1118 = vmatpush1.bf16.xpose.msra.mxu0 0
      %1119 = vmatprep.subr.bf16.mxu0 0
      %1120 = vmatpush1.bf16.xpose.msra.mxu0 0
      %1121 = vmatprep.subr.bf16.mxu0 0
      %1122 = vmatpush1.bf16.xpose.msra.mxu0 0
      %1123 = vmatprep.subr.bf16.mxu0 0
      %1124 = vmatpush1.bf16.xpose.msra.mxu0 0
      %1125 = vmatprep.subr.bf16.mxu0 0
      %1126 = vmatpush1.bf16.xpose.msra.mxu0 0
      %1127 = vmatprep.subr.bf16.mxu0 0
      %1128 = vmatpush1.bf16.xpose.msra.mxu0 0
      %1129 = vmatprep.subr.bf16.mxu0 0
      %1130 = vmatpush1.bf16.xpose.msra.mxu0 0
      %1131 = vmatprep.subr.bf16.mxu0 0
      %1132 = vmatpush1.bf16.xpose.msra.mxu0 0
      %1133 = vmatprep.subr.bf16.mxu0 0
      %1134 = vmatpush1.bf16.xpose.msra.mxu0 0
      %1135 = vmatprep.subr.bf16.mxu0 0
      %1136 = vmatpush1.bf16.xpose.msra.mxu0 0
      %1137 = vmatprep.subr.bf16.mxu0 0
      %1138 = vmatpush1.bf16.xpose.msra.mxu0 0
      %1139 = vmatprep.mubr.bf16.mxu0 0
      %1140 = vmatmul.mubr.bf16.gmra.mrb[0].mxu0 %v1102
      %v1141 = vpop.f32.mrb[0].mxu0
      %v1142 = vadd.f32 0.0, %v1141
      %v1143 = vpop.f32.mrb[0].mxu0
      %v1144 = vpop.f32.mrb[0].mxu0
      %v1145 = vpop.f32.mrb[0].mxu0
      %1146 = vdwg.mxu0
      %v1147 = vsel %vm757, %v799, -inf
      %1148 = vmax.xlane.f32.xlu0 %v1147
      %v1149 = vpop.xlane.xlu0 %1148
      %v1150 = vsel %vm757, %v848, -inf
      %1151 = vmax.xlane.f32.xlu0 %v1150
      %v1152 = vpop.xlane.xlu0 %1151
      %v1153 = vsel %vm757, %v897, -inf
      %1154 = vmax.xlane.f32.xlu0 %v1153
      %v1155 = vpop.xlane.xlu0 %1154
      %v1156 = vsel %vm757, %v946, -inf
      %1157 = vmax.xlane.f32.xlu0 %v1156
      %v1158 = vpop.xlane.xlu0 %1157
      %v1159 = vsel %vm757, %v995, -inf
      %1160 = vmax.xlane.f32.xlu0 %v1159
      %v1161 = vpop.xlane.xlu0 %1160
      %v1162 = vsel %vm757, %v1044, -inf
      %1163 = vmax.xlane.f32.xlu0 %v1162
      %v1164 = vpop.xlane.xlu0 %1163
      %v1165 = vsel %vm757, %v1093, -inf
      %1166 = vmax.xlane.f32.xlu0 %v1165
      %v1167 = vpop.xlane.xlu0 %1166
      %v1168 = vsel %vm757, %v1142, -inf
      %1169 = vmax.xlane.f32.xlu0 %v1168
      %v1170 = vpop.xlane.xlu0 %1169
      %v1171 = vsub.f32 %v799, %v1149
      %v1172 = vsub.f32 %v848, %v1152
      %v1173 = vsub.f32 %v897, %v1155
      %v1174 = vsub.f32 %v946, %v1158
      %v1175 = vsub.f32 %v995, %v1161
      %v1176 = vsub.f32 %v1044, %v1164
      %v1177 = vsub.f32 %v1093, %v1167
      %v1178 = vsub.f32 %v1142, %v1170
      %v1179 = vmul.f32 %v1171, 1.442695
      %v1180 = vpow.pop %v1179
      %v1181 = vmul.f32 %v1172, 1.442695
      %v1182 = vpow.pop %v1181
      %v1183 = vmul.f32 %v1173, 1.442695
      %v1184 = vpow.pop %v1183
      %v1185 = vmul.f32 %v1174, 1.442695
      %v1186 = vpow.pop %v1185
      %v1187 = vmul.f32 %v1175, 1.442695
      %v1188 = vpow.pop %v1187
      %v1189 = vmul.f32 %v1176, 1.442695
      %v1190 = vpow.pop %v1189
      %v1191 = vmul.f32 %v1177, 1.442695
      %v1192 = vpow.pop %v1191
      %v1193 = vmul.f32 %v1178, 1.442695
      %v1194 = vpow.pop %v1193
      %v1195 = vsel %vm757, %v1180, 0.0
      %1196 = vadd.xlane.f32.xlu0 %v1195
      %v1197 = vpop.xlane.xlu0 %1196
      %v1198 = vsel %vm757, %v1182, 0.0
      %1199 = vadd.xlane.f32.xlu0 %v1198
      %v1200 = vpop.xlane.xlu0 %1199
      %v1201 = vsel %vm757, %v1184, 0.0
      %1202 = vadd.xlane.f32.xlu0 %v1201
      %v1203 = vpop.xlane.xlu0 %1202
      %v1204 = vsel %vm757, %v1186, 0.0
      %1205 = vadd.xlane.f32.xlu0 %v1204
      %v1206 = vpop.xlane.xlu0 %1205
      %v1207 = vsel %vm757, %v1188, 0.0
      %1208 = vadd.xlane.f32.xlu0 %v1207
      %v1209 = vpop.xlane.xlu0 %1208
      %v1210 = vsel %vm757, %v1190, 0.0
      %1211 = vadd.xlane.f32.xlu0 %v1210
      %v1212 = vpop.xlane.xlu0 %1211
      %v1213 = vsel %vm757, %v1192, 0.0
      %1214 = vadd.xlane.f32.xlu0 %v1213
      %v1215 = vpop.xlane.xlu0 %1214
      %v1216 = vsel %vm757, %v1194, 0.0
      %1217 = vadd.xlane.f32.xlu0 %v1216
      %v1218 = vpop.xlane.xlu0 %1217
      %v1219 = vrcp.pop %v1197
      %v1220 = vrcp.pop %v1200
      %v1221 = vrcp.pop %v1203
      %v1222 = vrcp.pop %v1206
      %v1223 = vrcp.pop %v1209
      %v1224 = vrcp.pop %v1212
      %v1225 = vrcp.pop %v1215
      %v1226 = vrcp.pop %v1218
      %v1227 = vmul.f32 %v1180, %v1219
      %v1228 = vmul.f32 %v1182, %v1220
      %v1229 = vmul.f32 %v1184, %v1221
      %v1230 = vmul.f32 %v1186, %v1222
      %v1231 = vmul.f32 %v1188, %v1223
      %v1232 = vmul.f32 %v1190, %v1224
      %v1233 = vmul.f32 %v1192, %v1225
      %v1234 = vmul.f32 %v1194, %v1226
      %v1235 = vpack.c.bf16 %v1227, %v1227
      %v1236 = vpack.c.bf16 %v1228, %v1228
      %v1237 = vpack.c.bf16 %v1229, %v1229
      %v1238 = vpack.c.bf16 %v1230, %v1230
      %v1239 = vpack.c.bf16 %v1231, %v1231
      %v1240 = vpack.c.bf16 %v1232, %v1232
      %v1241 = vpack.c.bf16 %v1233, %v1233
      %v1242 = vpack.c.bf16 %v1234, %v1234
      %1243 = vrot.lane.b32.xlu0 %v746, 112
      %v1244 = vpop.permute.xlu0 %1243
      %v1246 = vsel %vm757, %v1235, 0
      %vm1248 = vcmask 1043456
      %v1250 = vsel %vm1248, %v1244, 0
      %1252 = vmatprep.subr.bf16.mxu0 0
      %1253 = vmatpush1.bf16.msra.mxu0 %v1250
      %1254 = vmatprep.subr.bf16.mxu0 0
      %1255 = vmatpush1.bf16.msra.mxu0 0
      %1256 = vmatprep.subr.bf16.mxu0 0
      %1257 = vmatpush1.bf16.msra.mxu0 0
      %1258 = vmatprep.subr.bf16.mxu0 0
      %1259 = vmatpush1.bf16.msra.mxu0 0
      %1260 = vmatprep.subr.bf16.mxu0 0
      %1261 = vmatpush1.bf16.msra.mxu0 0
      %1262 = vmatprep.subr.bf16.mxu0 0
      %1263 = vmatpush1.bf16.msra.mxu0 0
      %1264 = vmatprep.subr.bf16.mxu0 0
      %1265 = vmatpush1.bf16.msra.mxu0 0
      %1266 = vmatprep.subr.bf16.mxu0 0
      %1267 = vmatpush1.bf16.msra.mxu0 0
      %1268 = vmatprep.subr.bf16.mxu0 0
      %1269 = vmatpush1.bf16.msra.mxu0 0
      %1270 = vmatprep.subr.bf16.mxu0 0
      %1271 = vmatpush1.bf16.msra.mxu0 0
      %1272 = vmatprep.subr.bf16.mxu0 0
      %1273 = vmatpush1.bf16.msra.mxu0 0
      %1274 = vmatprep.subr.bf16.mxu0 0
      %1275 = vmatpush1.bf16.msra.mxu0 0
      %1276 = vmatprep.subr.bf16.mxu0 0
      %1277 = vmatpush1.bf16.msra.mxu0 0
      %1278 = vmatprep.subr.bf16.mxu0 0
      %1279 = vmatpush1.bf16.msra.mxu0 0
      %1280 = vmatprep.subr.bf16.mxu0 0
      %1281 = vmatpush1.bf16.msra.mxu0 0
      %1282 = vmatprep.subr.bf16.mxu0 0
      %1283 = vmatpush1.bf16.msra.mxu0 0
      %1284 = vmatprep.mubr.bf16.mxu0 0
      %1285 = vmatmul.mubr.bf16.gmra.mrb[0].mxu0 %v1246
      %v1286 = vpop.f32.mrb[0].mxu0
      %v1287 = vadd.f32 0.0, %v1286
      %v1288 = vpop.f32.mrb[0].mxu0
      %v1289 = vpop.f32.mrb[0].mxu0
      %v1290 = vpop.f32.mrb[0].mxu0
      %1291 = vdwg.mxu0
      %1292 = vrot.lane.b32.xlu0 %v747, 112
      %v1293 = vpop.permute.xlu0 %1292
      %v1295 = vsel %vm757, %v1236, 0
      %v1298 = vsel %vm1248, %v1293, 0
      %1300 = vmatprep.subr.bf16.mxu0 0
      %1301 = vmatpush1.bf16.msra.mxu0 %v1298
      %1302 = vmatprep.subr.bf16.mxu0 0
      %1303 = vmatpush1.bf16.msra.mxu0 0
      %1304 = vmatprep.subr.bf16.mxu0 0
      %1305 = vmatpush1.bf16.msra.mxu0 0
      %1306 = vmatprep.subr.bf16.mxu0 0
      %1307 = vmatpush1.bf16.msra.mxu0 0
      %1308 = vmatprep.subr.bf16.mxu0 0
      %1309 = vmatpush1.bf16.msra.mxu0 0
      %1310 = vmatprep.subr.bf16.mxu0 0
      %1311 = vmatpush1.bf16.msra.mxu0 0
      %1312 = vmatprep.subr.bf16.mxu0 0
      %1313 = vmatpush1.bf16.msra.mxu0 0
      %1314 = vmatprep.subr.bf16.mxu0 0
      %1315 = vmatpush1.bf16.msra.mxu0 0
      %1316 = vmatprep.subr.bf16.mxu0 0
      %1317 = vmatpush1.bf16.msra.mxu0 0
      %1318 = vmatprep.subr.bf16.mxu0 0
      %1319 = vmatpush1.bf16.msra.mxu0 0
      %1320 = vmatprep.subr.bf16.mxu0 0
      %1321 = vmatpush1.bf16.msra.mxu0 0
      %1322 = vmatprep.subr.bf16.mxu0 0
      %1323 = vmatpush1.bf16.msra.mxu0 0
      %1324 = vmatprep.subr.bf16.mxu0 0
      %1325 = vmatpush1.bf16.msra.mxu0 0
      %1326 = vmatprep.subr.bf16.mxu0 0
      %1327 = vmatpush1.bf16.msra.mxu0 0
      %1328 = vmatprep.subr.bf16.mxu0 0
      %1329 = vmatpush1.bf16.msra.mxu0 0
      %1330 = vmatprep.subr.bf16.mxu0 0
      %1331 = vmatpush1.bf16.msra.mxu0 0
      %1332 = vmatprep.mubr.bf16.mxu0 0
      %1333 = vmatmul.mubr.bf16.gmra.mrb[0].mxu0 %v1295
      %v1334 = vpop.f32.mrb[0].mxu0
      %v1335 = vadd.f32 0.0, %v1334
      %v1336 = vpop.f32.mrb[0].mxu0
      %v1337 = vpop.f32.mrb[0].mxu0
      %v1338 = vpop.f32.mrb[0].mxu0
      %1339 = vdwg.mxu0
      %1340 = vrot.lane.b32.xlu0 %v748, 112
      %v1341 = vpop.permute.xlu0 %1340
      %v1343 = vsel %vm757, %v1237, 0
      %v1346 = vsel %vm1248, %v1341, 0
      %1348 = vmatprep.subr.bf16.mxu0 0
      %1349 = vmatpush1.bf16.msra.mxu0 %v1346
      %1350 = vmatprep.subr.bf16.mxu0 0
      %1351 = vmatpush1.bf16.msra.mxu0 0
      %1352 = vmatprep.subr.bf16.mxu0 0
      %1353 = vmatpush1.bf16.msra.mxu0 0
      %1354 = vmatprep.subr.bf16.mxu0 0
      %1355 = vmatpush1.bf16.msra.mxu0 0
      %1356 = vmatprep.subr.bf16.mxu0 0
      %1357 = vmatpush1.bf16.msra.mxu0 0
      %1358 = vmatprep.subr.bf16.mxu0 0
      %1359 = vmatpush1.bf16.msra.mxu0 0
      %1360 = vmatprep.subr.bf16.mxu0 0
      %1361 = vmatpush1.bf16.msra.mxu0 0
      %1362 = vmatprep.subr.bf16.mxu0 0
      %1363 = vmatpush1.bf16.msra.mxu0 0
      %1364 = vmatprep.subr.bf16.mxu0 0
      %1365 = vmatpush1.bf16.msra.mxu0 0
      %1366 = vmatprep.subr.bf16.mxu0 0
      %1367 = vmatpush1.bf16.msra.mxu0 0
      %1368 = vmatprep.subr.bf16.mxu0 0
      %1369 = vmatpush1.bf16.msra.mxu0 0
      %1370 = vmatprep.subr.bf16.mxu0 0
      %1371 = vmatpush1.bf16.msra.mxu0 0
      %1372 = vmatprep.subr.bf16.mxu0 0
      %1373 = vmatpush1.bf16.msra.mxu0 0
      %1374 = vmatprep.subr.bf16.mxu0 0
      %1375 = vmatpush1.bf16.msra.mxu0 0
      %1376 = vmatprep.subr.bf16.mxu0 0
      %1377 = vmatpush1.bf16.msra.mxu0 0
      %1378 = vmatprep.subr.bf16.mxu0 0
      %1379 = vmatpush1.bf16.msra.mxu0 0
      %1380 = vmatprep.mubr.bf16.mxu0 0
      %1381 = vmatmul.mubr.bf16.gmra.mrb[0].mxu0 %v1343
      %v1382 = vpop.f32.mrb[0].mxu0
      %v1383 = vadd.f32 0.0, %v1382
      %v1384 = vpop.f32.mrb[0].mxu0
      %v1385 = vpop.f32.mrb[0].mxu0
      %v1386 = vpop.f32.mrb[0].mxu0
      %1387 = vdwg.mxu0
      %1388 = vrot.lane.b32.xlu0 %v749, 112
      %v1389 = vpop.permute.xlu0 %1388
      %v1391 = vsel %vm757, %v1238, 0
      %v1394 = vsel %vm1248, %v1389, 0
      %1396 = vmatprep.subr.bf16.mxu0 0
      %1397 = vmatpush1.bf16.msra.mxu0 %v1394
      %1398 = vmatprep.subr.bf16.mxu0 0
      %1399 = vmatpush1.bf16.msra.mxu0 0
      %1400 = vmatprep.subr.bf16.mxu0 0
      %1401 = vmatpush1.bf16.msra.mxu0 0
      %1402 = vmatprep.subr.bf16.mxu0 0
      %1403 = vmatpush1.bf16.msra.mxu0 0
      %1404 = vmatprep.subr.bf16.mxu0 0
      %1405 = vmatpush1.bf16.msra.mxu0 0
      %1406 = vmatprep.subr.bf16.mxu0 0
      %1407 = vmatpush1.bf16.msra.mxu0 0
      %1408 = vmatprep.subr.bf16.mxu0 0
      %1409 = vmatpush1.bf16.msra.mxu0 0
      %1410 = vmatprep.subr.bf16.mxu0 0
      %1411 = vmatpush1.bf16.msra.mxu0 0
      %1412 = vmatprep.subr.bf16.mxu0 0
      %1413 = vmatpush1.bf16.msra.mxu0 0
      %1414 = vmatprep.subr.bf16.mxu0 0
      %1415 = vmatpush1.bf16.msra.mxu0 0
      %1416 = vmatprep.subr.bf16.mxu0 0
      %1417 = vmatpush1.bf16.msra.mxu0 0
      %1418 = vmatprep.subr.bf16.mxu0 0
      %1419 = vmatpush1.bf16.msra.mxu0 0
      %1420 = vmatprep.subr.bf16.mxu0 0
      %1421 = vmatpush1.bf16.msra.mxu0 0
      %1422 = vmatprep.subr.bf16.mxu0 0
      %1423 = vmatpush1.bf16.msra.mxu0 0
      %1424 = vmatprep.subr.bf16.mxu0 0
      %1425 = vmatpush1.bf16.msra.mxu0 0
      %1426 = vmatprep.subr.bf16.mxu0 0
      %1427 = vmatpush1.bf16.msra.mxu0 0
      %1428 = vmatprep.mubr.bf16.mxu0 0
      %1429 = vmatmul.mubr.bf16.gmra.mrb[0].mxu0 %v1391
      %v1430 = vpop.f32.mrb[0].mxu0
      %v1431 = vadd.f32 0.0, %v1430
      %v1432 = vpop.f32.mrb[0].mxu0
      %v1433 = vpop.f32.mrb[0].mxu0
      %v1434 = vpop.f32.mrb[0].mxu0
      %1435 = vdwg.mxu0
      %1436 = vrot.lane.b32.xlu0 %v750, 112
      %v1437 = vpop.permute.xlu0 %1436
      %v1439 = vsel %vm757, %v1239, 0
      %v1442 = vsel %vm1248, %v1437, 0
      %1444 = vmatprep.subr.bf16.mxu0 0
      %1445 = vmatpush1.bf16.msra.mxu0 %v1442
      %1446 = vmatprep.subr.bf16.mxu0 0
      %1447 = vmatpush1.bf16.msra.mxu0 0
      %1448 = vmatprep.subr.bf16.mxu0 0
      %1449 = vmatpush1.bf16.msra.mxu0 0
      %1450 = vmatprep.subr.bf16.mxu0 0
      %1451 = vmatpush1.bf16.msra.mxu0 0
      %1452 = vmatprep.subr.bf16.mxu0 0
      %1453 = vmatpush1.bf16.msra.mxu0 0
      %1454 = vmatprep.subr.bf16.mxu0 0
      %1455 = vmatpush1.bf16.msra.mxu0 0
      %1456 = vmatprep.subr.bf16.mxu0 0
      %1457 = vmatpush1.bf16.msra.mxu0 0
      %1458 = vmatprep.subr.bf16.mxu0 0
      %1459 = vmatpush1.bf16.msra.mxu0 0
      %1460 = vmatprep.subr.bf16.mxu0 0
      %1461 = vmatpush1.bf16.msra.mxu0 0
      %1462 = vmatprep.subr.bf16.mxu0 0
      %1463 = vmatpush1.bf16.msra.mxu0 0
      %1464 = vmatprep.subr.bf16.mxu0 0
      %1465 = vmatpush1.bf16.msra.mxu0 0
      %1466 = vmatprep.subr.bf16.mxu0 0
      %1467 = vmatpush1.bf16.msra.mxu0 0
      %1468 = vmatprep.subr.bf16.mxu0 0
      %1469 = vmatpush1.bf16.msra.mxu0 0
      %1470 = vmatprep.subr.bf16.mxu0 0
      %1471 = vmatpush1.bf16.msra.mxu0 0
      %1472 = vmatprep.subr.bf16.mxu0 0
      %1473 = vmatpush1.bf16.msra.mxu0 0
      %1474 = vmatprep.subr.bf16.mxu0 0
      %1475 = vmatpush1.bf16.msra.mxu0 0
      %1476 = vmatprep.mubr.bf16.mxu0 0
      %1477 = vmatmul.mubr.bf16.gmra.mrb[0].mxu0 %v1439
      %v1478 = vpop.f32.mrb[0].mxu0
      %v1479 = vadd.f32 0.0, %v1478
      %v1480 = vpop.f32.mrb[0].mxu0
      %v1481 = vpop.f32.mrb[0].mxu0
      %v1482 = vpop.f32.mrb[0].mxu0
      %1483 = vdwg.mxu0
      %1484 = vrot.lane.b32.xlu0 %v751, 112
      %v1485 = vpop.permute.xlu0 %1484
      %v1487 = vsel %vm757, %v1240, 0
      %v1490 = vsel %vm1248, %v1485, 0
      %1492 = vmatprep.subr.bf16.mxu0 0
      %1493 = vmatpush1.bf16.msra.mxu0 %v1490
      %1494 = vmatprep.subr.bf16.mxu0 0
      %1495 = vmatpush1.bf16.msra.mxu0 0
      %1496 = vmatprep.subr.bf16.mxu0 0
      %1497 = vmatpush1.bf16.msra.mxu0 0
      %1498 = vmatprep.subr.bf16.mxu0 0
      %1499 = vmatpush1.bf16.msra.mxu0 0
      %1500 = vmatprep.subr.bf16.mxu0 0
      %1501 = vmatpush1.bf16.msra.mxu0 0
      %1502 = vmatprep.subr.bf16.mxu0 0
      %1503 = vmatpush1.bf16.msra.mxu0 0
      %1504 = vmatprep.subr.bf16.mxu0 0
      %1505 = vmatpush1.bf16.msra.mxu0 0
      %1506 = vmatprep.subr.bf16.mxu0 0
      %1507 = vmatpush1.bf16.msra.mxu0 0
      %1508 = vmatprep.subr.bf16.mxu0 0
      %1509 = vmatpush1.bf16.msra.mxu0 0
      %1510 = vmatprep.subr.bf16.mxu0 0
      %1511 = vmatpush1.bf16.msra.mxu0 0
      %1512 = vmatprep.subr.bf16.mxu0 0
      %1513 = vmatpush1.bf16.msra.mxu0 0
      %1514 = vmatprep.subr.bf16.mxu0 0
      %1515 = vmatpush1.bf16.msra.mxu0 0
      %1516 = vmatprep.subr.bf16.mxu0 0
      %1517 = vmatpush1.bf16.msra.mxu0 0
      %1518 = vmatprep.subr.bf16.mxu0 0
      %1519 = vmatpush1.bf16.msra.mxu0 0
      %1520 = vmatprep.subr.bf16.mxu0 0
      %1521 = vmatpush1.bf16.msra.mxu0 0
      %1522 = vmatprep.subr.bf16.mxu0 0
      %1523 = vmatpush1.bf16.msra.mxu0 0
      %1524 = vmatprep.mubr.bf16.mxu0 0
      %1525 = vmatmul.mubr.bf16.gmra.mrb[0].mxu0 %v1487
      %v1526 = vpop.f32.mrb[0].mxu0
      %v1527 = vadd.f32 0.0, %v1526
      %v1528 = vpop.f32.mrb[0].mxu0
      %v1529 = vpop.f32.mrb[0].mxu0
      %v1530 = vpop.f32.mrb[0].mxu0
      %1531 = vdwg.mxu0
      %1532 = vrot.lane.b32.xlu0 %v752, 112
      %v1533 = vpop.permute.xlu0 %1532
      %v1535 = vsel %vm757, %v1241, 0
      %v1538 = vsel %vm1248, %v1533, 0
      %1540 = vmatprep.subr.bf16.mxu0 0
      %1541 = vmatpush1.bf16.msra.mxu0 %v1538
      %1542 = vmatprep.subr.bf16.mxu0 0
      %1543 = vmatpush1.bf16.msra.mxu0 0
      %1544 = vmatprep.subr.bf16.mxu0 0
      %1545 = vmatpush1.bf16.msra.mxu0 0
      %1546 = vmatprep.subr.bf16.mxu0 0
      %1547 = vmatpush1.bf16.msra.mxu0 0
      %1548 = vmatprep.subr.bf16.mxu0 0
      %1549 = vmatpush1.bf16.msra.mxu0 0
      %1550 = vmatprep.subr.bf16.mxu0 0
      %1551 = vmatpush1.bf16.msra.mxu0 0
      %1552 = vmatprep.subr.bf16.mxu0 0
      %1553 = vmatpush1.bf16.msra.mxu0 0
      %1554 = vmatprep.subr.bf16.mxu0 0
      %1555 = vmatpush1.bf16.msra.mxu0 0
      %1556 = vmatprep.subr.bf16.mxu0 0
      %1557 = vmatpush1.bf16.msra.mxu0 0
      %1558 = vmatprep.subr.bf16.mxu0 0
      %1559 = vmatpush1.bf16.msra.mxu0 0
      %1560 = vmatprep.subr.bf16.mxu0 0
      %1561 = vmatpush1.bf16.msra.mxu0 0
      %1562 = vmatprep.subr.bf16.mxu0 0
      %1563 = vmatpush1.bf16.msra.mxu0 0
      %1564 = vmatprep.subr.bf16.mxu0 0
      %1565 = vmatpush1.bf16.msra.mxu0 0
      %1566 = vmatprep.subr.bf16.mxu0 0
      %1567 = vmatpush1.bf16.msra.mxu0 0
      %1568 = vmatprep.subr.bf16.mxu0 0
      %1569 = vmatpush1.bf16.msra.mxu0 0
      %1570 = vmatprep.subr.bf16.mxu0 0
      %1571 = vmatpush1.bf16.msra.mxu0 0
      %1572 = vmatprep.mubr.bf16.mxu0 0
      %1573 = vmatmul.mubr.bf16.gmra.mrb[0].mxu0 %v1535
      %v1574 = vpop.f32.mrb[0].mxu0
      %v1575 = vadd.f32 0.0, %v1574
      %v1576 = vpop.f32.mrb[0].mxu0
      %v1577 = vpop.f32.mrb[0].mxu0
      %v1578 = vpop.f32.mrb[0].mxu0
      %1579 = vdwg.mxu0
      %1580 = vrot.lane.b32.xlu0 %v753, 112
      %v1581 = vpop.permute.xlu0 %1580
      %v1583 = vsel %vm757, %v1242, 0
      %v1586 = vsel %vm1248, %v1581, 0
      %1588 = vmatprep.subr.bf16.mxu0 0
      %1589 = vmatpush1.bf16.msra.mxu0 %v1586
      %1590 = vmatprep.subr.bf16.mxu0 0
      %1591 = vmatpush1.bf16.msra.mxu0 0
      %1592 = vmatprep.subr.bf16.mxu0 0
      %1593 = vmatpush1.bf16.msra.mxu0 0
      %1594 = vmatprep.subr.bf16.mxu0 0
      %1595 = vmatpush1.bf16.msra.mxu0 0
      %1596 = vmatprep.subr.bf16.mxu0 0
      %1597 = vmatpush1.bf16.msra.mxu0 0
      %1598 = vmatprep.subr.bf16.mxu0 0
      %1599 = vmatpush1.bf16.msra.mxu0 0
      %1600 = vmatprep.subr.bf16.mxu0 0
      %1601 = vmatpush1.bf16.msra.mxu0 0
      %1602 = vmatprep.subr.bf16.mxu0 0
      %1603 = vmatpush1.bf16.msra.mxu0 0
      %1604 = vmatprep.subr.bf16.mxu0 0
      %1605 = vmatpush1.bf16.msra.mxu0 0
      %1606 = vmatprep.subr.bf16.mxu0 0
      %1607 = vmatpush1.bf16.msra.mxu0 0
      %1608 = vmatprep.subr.bf16.mxu0 0
      %1609 = vmatpush1.bf16.msra.mxu0 0
      %1610 = vmatprep.subr.bf16.mxu0 0
      %1611 = vmatpush1.bf16.msra.mxu0 0
      %1612 = vmatprep.subr.bf16.mxu0 0
      %1613 = vmatpush1.bf16.msra.mxu0 0
      %1614 = vmatprep.subr.bf16.mxu0 0
      %1615 = vmatpush1.bf16.msra.mxu0 0
      %1616 = vmatprep.subr.bf16.mxu0 0
      %1617 = vmatpush1.bf16.msra.mxu0 0
      %1618 = vmatprep.subr.bf16.mxu0 0
      %1619 = vmatpush1.bf16.msra.mxu0 0
      %1620 = vmatprep.mubr.bf16.mxu0 0
      %1621 = vmatmul.mubr.bf16.gmra.mrb[0].mxu0 %v1583
      %v1622 = vpop.f32.mrb[0].mxu0
      %v1623 = vadd.f32 0.0, %v1622
      %v1624 = vpop.f32.mrb[0].mxu0
      %v1625 = vpop.f32.mrb[0].mxu0
      %v1626 = vpop.f32.mrb[0].mxu0
      %1627 = vdwg.mxu0
      %1630 = vrot.lane.b32.xlu0 %v1383, 8
      %v1631 = vpop.permute.xlu0 %1630
      %1632 = vrot.lane.b32.xlu0 %v1431, 8
      %v1633 = vpop.permute.xlu0 %1632
      %1638 = vrot.lane.b32.xlu0 %v1479, 16
      %v1639 = vpop.permute.xlu0 %1638
      %1640 = vrot.lane.b32.xlu0 %v1527, 16
      %v1641 = vpop.permute.xlu0 %1640
      %1646 = vrot.lane.b32.xlu0 %v1575, 24
      %v1647 = vpop.permute.xlu0 %1646
      %1648 = vrot.lane.b32.xlu0 %v1623, 24
      %v1649 = vpop.permute.xlu0 %1648
      %v1652 = vsel %vm757, %v1287, %v1631
      %v1653 = vsel %vm757, %v1335, %v1633
      %vm1654 = vcmask 130048
      %v1655 = vsel %vm1654, %v1652, %v1639
      %v1656 = vsel %vm1654, %v1653, %v1641
      %vm1657 = vcmask 195584
      %v1658 = vsel %vm1657, %v1655, %v1647
      %v1659 = vsel %vm1657, %v1656, %v1649
      %v1660 = vpack.c.bf16 %v1659, %v1658
      %v1661 = vld [vmem:[%s575] sm:$0xf]
      %v1662 = vld [vmem:[%s575 + $0x4] sm:$0xf]
      %v1663 = vld [vmem:[%s575 + $0x8] sm:$0xf]
      %v1664 = vld [vmem:[%s575 + $0xc] sm:$0xf]
      %v1669 = vunpack.c.l.b16 %v1661
      %v1670 = vunpack.c.l.b16 %v1662
      %v1671 = vunpack.c.l.b16 %v1663
      %v1672 = vunpack.c.l.b16 %v1664
      %v1673 = vpack.c.b16 %v1670, %v1669
      %v1674 = vpack.c.b16 %v1672, %v1671
      %v1678 = vsel %vm621, %v1660, 0
      %1680 = vmatprep.subr.bf16.mxu0 0
      %1681 = vmatpush1.bf16.msra.mxu0 %v1673
      %1682 = vmatprep.subr.bf16.mxu0 0
      %1683 = vmatpush1.bf16.msra.mxu0 %v1674
      %1684 = vmatprep.subr.bf16.mxu0 0
      %1685 = vmatpush1.bf16.msra.mxu0 0
      %1686 = vmatprep.subr.bf16.mxu0 0
      %1687 = vmatpush1.bf16.msra.mxu0 0
      %1688 = vmatprep.subr.bf16.mxu0 0
      %1689 = vmatpush1.bf16.msra.mxu0 0
      %1690 = vmatprep.subr.bf16.mxu0 0
      %1691 = vmatpush1.bf16.msra.mxu0 0
      %1692 = vmatprep.subr.bf16.mxu0 0
      %1693 = vmatpush1.bf16.msra.mxu0 0
      %1694 = vmatprep.subr.bf16.mxu0 0
      %1695 = vmatpush1.bf16.msra.mxu0 0
      %1696 = vmatprep.subr.bf16.mxu0 0
      %1697 = vmatpush1.bf16.msra.mxu0 0
      %1698 = vmatprep.subr.bf16.mxu0 0
      %1699 = vmatpush1.bf16.msra.mxu0 0
      %1700 = vmatprep.subr.bf16.mxu0 0
      %1701 = vmatpush1.bf16.msra.mxu0 0
      %1702 = vmatprep.subr.bf16.mxu0 0
      %1703 = vmatpush1.bf16.msra.mxu0 0
      %1704 = vmatprep.subr.bf16.mxu0 0
      %1705 = vmatpush1.bf16.msra.mxu0 0
      %1706 = vmatprep.subr.bf16.mxu0 0
      %1707 = vmatpush1.bf16.msra.mxu0 0
      %1708 = vmatprep.subr.bf16.mxu0 0
      %1709 = vmatpush1.bf16.msra.mxu0 0
      %1710 = vmatprep.subr.bf16.mxu0 0
      %1711 = vmatpush1.bf16.msra.mxu0 0
      %1712 = vmatprep.mubr.bf16.mxu0 0
      %1713 = vmatmul.mubr.bf16.gmra.mrb[0].mxu0 %v1678
      %v1714 = vpop.f32.mrb[0].mxu0
      %v1715 = vadd.f32 0.0, %v1714
      %v1716 = vpop.f32.mrb[0].mxu0
      %v1717 = vpop.f32.mrb[0].mxu0
      %v1718 = vadd.f32 0.0, %v1717
      %v1719 = vpop.f32.mrb[0].mxu0
      %1720 = vdwg.mxu0
      %v1721 = vadd.f32 %v617, %v1715
      %v1722 = vadd.f32 %v618, %v1718
      %v1723 = vld [vmem:[%s578] sm:$0x1]
      %v1725 = vlaneseq
      %v1726 = vshrl.u32 %v1725, 7
      %v1727 = vsub.s32 0, %v1726
      %v1728 = vrot.slane %v1723, %v1727
      %v1730 = vadd.f32 %v1721, %v1728
      %v1731 = vadd.f32 %v1722, %v1728
      %v1732 = vld [vmem:[%s581] sm:$0x1]
      %v1733 = vld [vmem:[%s584] sm:$0x1]
      %v1734 = vsel %vm621, %v1730, 0.0
      %1735 = vadd.xlane.f32.xlu0 %v1734
      %v1736 = vpop.xlane.xlu0 %1735
      %v1737 = vsel %vm621, %v1731, 0.0
      %1738 = vadd.xlane.f32.xlu0 %v1737
      %v1739 = vpop.xlane.xlu0 %1738
      %v1740 = vmul.f32 %v1736, %v628
      %v1741 = vmul.f32 %v1739, %v628
      %v1742 = vsub.f32 %v1730, %v1740
      %v1743 = vsub.f32 %v1731, %v1741
      %v1744 = vmul.f32 %v1742, %v1742
      %v1745 = vmul.f32 %v1743, %v1743
      %v1746 = vsel %vm621, %v1744, 0.0
      %1747 = vadd.xlane.f32.xlu0 %v1746
      %v1748 = vpop.xlane.xlu0 %1747
      %v1749 = vsel %vm621, %v1745, 0.0
      %1750 = vadd.xlane.f32.xlu0 %v1749
      %v1751 = vpop.xlane.xlu0 %1750
      %v1752 = vmul.f32 %v1748, %v628
      %v1753 = vmul.f32 %v1751, %v628
      %v1754 = vadd.f32 %v1752, 1e-05
      %v1755 = vadd.f32 %v1753, 1e-05
      %v1756 = vrsqrt.pop %v1754
      %v1757 = vrsqrt.pop %v1755
      %v1758 = vmul.f32 %v1742, %v1756
      %v1759 = vmul.f32 %v1743, %v1757
      %v1761 = vlaneseq
      %v1762 = vshrl.u32 %v1761, 7
      %v1763 = vsub.s32 0, %v1762
      %v1764 = vrot.slane %v1732, %v1763
      %v1766 = vmul.f32 %v1758, %v1764
      %v1767 = vmul.f32 %v1759, %v1764
      %v1769 = vlaneseq
      %v1770 = vshrl.u32 %v1769, 7
      %v1771 = vsub.s32 0, %v1770
      %v1772 = vrot.slane %v1733, %v1771
      %v1774 = vadd.f32 %v1766, %v1772
      %v1775 = vadd.f32 %v1767, %v1772
      %v1776 = vpack.c.bf16 %v1775, %v1774
      %v1777 = vld [vmem:[%s589] sm:$0xf]
      %v1778 = vld [vmem:[%s589 + $0x4] sm:$0xf]
      %v1779 = vld [vmem:[%s589 + $0x8] sm:$0xf]
      %v1780 = vld [vmem:[%s589 + $0xc] sm:$0xf]
      %v1781 = vld [vmem:[%s592] sm:$0x1]
      %v1783 = vlaneseq
      %v1784 = vshrl.u32 %v1783, 7
      %v1785 = vsub.s32 0, %v1784
      %v1786 = vrot.slane %v1781, %v1785
      %v1792 = vunpack.c.l.b16 %v1777
      %v1793 = vunpack.c.l.b16 %v1778
      %v1794 = vunpack.c.l.b16 %v1779
      %v1795 = vunpack.c.l.b16 %v1780
      %v1796 = vpack.c.b16 %v1793, %v1792
      %v1797 = vpack.c.b16 %v1795, %v1794
      %v1801 = vsel %vm621, %v1776, 0
      %1803 = vmatprep.subr.bf16.mxu0 0
      %1804 = vmatpush1.bf16.msra.mxu0 %v1796
      %1805 = vmatprep.subr.bf16.mxu0 0
      %1806 = vmatpush1.bf16.msra.mxu0 %v1797
      %1807 = vmatprep.subr.bf16.mxu0 0
      %1808 = vmatpush1.bf16.msra.mxu0 0
      %1809 = vmatprep.subr.bf16.mxu0 0
      %1810 = vmatpush1.bf16.msra.mxu0 0
      %1811 = vmatprep.subr.bf16.mxu0 0
      %1812 = vmatpush1.bf16.msra.mxu0 0
      %1813 = vmatprep.subr.bf16.mxu0 0
      %1814 = vmatpush1.bf16.msra.mxu0 0
      %1815 = vmatprep.subr.bf16.mxu0 0
      %1816 = vmatpush1.bf16.msra.mxu0 0
      %1817 = vmatprep.subr.bf16.mxu0 0
      %1818 = vmatpush1.bf16.msra.mxu0 0
      %1819 = vmatprep.subr.bf16.mxu0 0
      %1820 = vmatpush1.bf16.msra.mxu0 0
      %1821 = vmatprep.subr.bf16.mxu0 0
      %1822 = vmatpush1.bf16.msra.mxu0 0
      %1823 = vmatprep.subr.bf16.mxu0 0
      %1824 = vmatpush1.bf16.msra.mxu0 0
      %1825 = vmatprep.subr.bf16.mxu0 0
      %1826 = vmatpush1.bf16.msra.mxu0 0
      %1827 = vmatprep.subr.bf16.mxu0 0
      %1828 = vmatpush1.bf16.msra.mxu0 0
      %1829 = vmatprep.subr.bf16.mxu0 0
      %1830 = vmatpush1.bf16.msra.mxu0 0
      %1831 = vmatprep.subr.bf16.mxu0 0
      %1832 = vmatpush1.bf16.msra.mxu0 0
      %1833 = vmatprep.subr.bf16.mxu0 0
      %1834 = vmatpush1.bf16.msra.mxu0 0
      %1835 = vmatprep.mubr.bf16.mxu0 0
      %1836 = vmatmul.mubr.bf16.gmra.mrb[0].mxu0 %v1801
      %v1837 = vpop.f32.mrb[0].mxu0
      %v1838 = vadd.f32 %v1786, %v1837
      %v1839 = vpop.f32.mrb[0].mxu0
      %v1840 = vpop.f32.mrb[0].mxu0
      %v1841 = vadd.f32 %v1786, %v1840
      %v1842 = vpop.f32.mrb[0].mxu0
      %1843 = vdwg.mxu0
      %v1844 = vmul.f32 %v1838, %v1838
      %v1845 = vmul.f32 %v1841, %v1841
      %v1846 = vmul.f32 %v1838, %v1844
      %v1847 = vmul.f32 %v1841, %v1845
      %v1848 = vmul.f32 %v1846, 0.044715
      %v1849 = vmul.f32 %v1847, 0.044715
      %v1850 = vadd.f32 %v1838, %v1848
      %v1851 = vadd.f32 %v1841, %v1849
      %v1852 = vmul.f32 %v1850, 0.7978846
      %v1853 = vmul.f32 %v1851, 0.7978846
      %v1854 = vtanh.pop %v1852
      %v1855 = vtanh.pop %v1853
      %v1856 = vadd.f32 %v1854, 1.0
      %v1857 = vadd.f32 %v1855, 1.0
      %v1858 = vmul.f32 %v1856, 0.5
      %v1859 = vmul.f32 %v1857, 0.5
      %v1860 = vmul.f32 %v1838, %v1858
      %v1861 = vmul.f32 %v1841, %v1859
      %v1862 = vpack.c.bf16 %v1861, %v1860
      %v1863 = vld [vmem:[%s597] sm:$0xf]
      %v1864 = vld [vmem:[%s597 + $0x4] sm:$0xf]
      %v1865 = vld [vmem:[%s597 + $0x8] sm:$0xf]
      %v1866 = vld [vmem:[%s597 + $0xc] sm:$0xf]
      %v1867 = vld [vmem:[%s597 + $0x10] sm:$0xf]
      %v1868 = vld [vmem:[%s597 + $0x14] sm:$0xf]
      %v1869 = vld [vmem:[%s597 + $0x18] sm:$0xf]
      %v1870 = vld [vmem:[%s597 + $0x1c] sm:$0xf]
      %v1871 = vld [vmem:[%s597 + $0x20] sm:$0xf]
      %v1872 = vld [vmem:[%s597 + $0x24] sm:$0xf]
      %v1873 = vld [vmem:[%s597 + $0x28] sm:$0xf]
      %v1874 = vld [vmem:[%s597 + $0x2c] sm:$0xf]
      %v1875 = vld [vmem:[%s597 + $0x30] sm:$0xf]
      %v1876 = vld [vmem:[%s597 + $0x34] sm:$0xf]
      %v1877 = vld [vmem:[%s597 + $0x38] sm:$0xf]
      %v1878 = vld [vmem:[%s597 + $0x3c] sm:$0xf]
      %v1879 = vld [vmem:[%s600] sm:$0x1]
      %v1881 = vlaneseq
      %v1882 = vshrl.u32 %v1881, 7
      %v1883 = vsub.s32 0, %v1882
      %v1884 = vrot.slane %v1879, %v1883
      %v1902 = vunpack.c.l.b16 %v1863
      %v1903 = vunpack.c.l.b16 %v1864
      %v1904 = vunpack.c.l.b16 %v1865
      %v1905 = vunpack.c.l.b16 %v1866
      %v1906 = vunpack.c.l.b16 %v1867
      %v1907 = vunpack.c.l.b16 %v1868
      %v1908 = vunpack.c.l.b16 %v1869
      %v1909 = vunpack.c.l.b16 %v1870
      %v1910 = vunpack.c.l.b16 %v1871
      %v1911 = vunpack.c.l.b16 %v1872
      %v1912 = vunpack.c.l.b16 %v1873
      %v1913 = vunpack.c.l.b16 %v1874
      %v1914 = vunpack.c.l.b16 %v1875
      %v1915 = vunpack.c.l.b16 %v1876
      %v1916 = vunpack.c.l.b16 %v1877
      %v1917 = vunpack.c.l.b16 %v1878
      %v1918 = vpack.c.b16 %v1903, %v1902
      %v1919 = vpack.c.b16 %v1905, %v1904
      %v1920 = vpack.c.b16 %v1907, %v1906
      %v1921 = vpack.c.b16 %v1909, %v1908
      %v1922 = vpack.c.b16 %v1911, %v1910
      %v1923 = vpack.c.b16 %v1913, %v1912
      %v1924 = vpack.c.b16 %v1915, %v1914
      %v1925 = vpack.c.b16 %v1917, %v1916
      %1934 = vmatprep.subr.bf16.mxu0 0
      %1935 = vmatpush1.bf16.msra.mxu0 %v1918
      %1936 = vmatprep.subr.bf16.mxu0 0
      %1937 = vmatpush1.bf16.msra.mxu0 %v1919
      %1938 = vmatprep.subr.bf16.mxu0 0
      %1939 = vmatpush1.bf16.msra.mxu0 %v1920
      %1940 = vmatprep.subr.bf16.mxu0 0
      %1941 = vmatpush1.bf16.msra.mxu0 %v1921
      %1942 = vmatprep.subr.bf16.mxu0 0
      %1943 = vmatpush1.bf16.msra.mxu0 %v1922
      %1944 = vmatprep.subr.bf16.mxu0 0
      %1945 = vmatpush1.bf16.msra.mxu0 %v1923
      %1946 = vmatprep.subr.bf16.mxu0 0
      %1947 = vmatpush1.bf16.msra.mxu0 %v1924
      %1948 = vmatprep.subr.bf16.mxu0 0
      %1949 = vmatpush1.bf16.msra.mxu0 %v1925
      %1950 = vmatprep.subr.bf16.mxu0 0
      %1951 = vmatpush1.bf16.msra.mxu0 0
      %1952 = vmatprep.subr.bf16.mxu0 0
      %1953 = vmatpush1.bf16.msra.mxu0 0
      %1954 = vmatprep.subr.bf16.mxu0 0
      %1955 = vmatpush1.bf16.msra.mxu0 0
      %1956 = vmatprep.subr.bf16.mxu0 0
      %1957 = vmatpush1.bf16.msra.mxu0 0
      %1958 = vmatprep.subr.bf16.mxu0 0
      %1959 = vmatpush1.bf16.msra.mxu0 0
      %1960 = vmatprep.subr.bf16.mxu0 0
      %1961 = vmatpush1.bf16.msra.mxu0 0
      %1962 = vmatprep.subr.bf16.mxu0 0
      %1963 = vmatpush1.bf16.msra.mxu0 0
      %1964 = vmatprep.subr.bf16.mxu0 0
      %1965 = vmatpush1.bf16.msra.mxu0 0
      %1966 = vmatprep.mubr.bf16.mxu0 0
      %1967 = vmatmul.mubr.bf16.gmra.mrb[0].mxu0 %v1862
      %v1968 = vpop.f32.mrb[0].mxu0
      %v1969 = vadd.f32 %v1884, %v1968
      %v1970 = vpop.f32.mrb[0].mxu0
      %v1971 = vpop.f32.mrb[0].mxu0
      %v1972 = vadd.f32 %v1884, %v1971
      %v1973 = vpop.f32.mrb[0].mxu0
      %1974 = vdwg.mxu0
      %v1975 = vadd.f32 %v1730, %v1969
      %v1976 = vadd.f32 %v1731, %v1972
      %1977 = vst.msk [vmem:[%s605] sm:$0xff] %vm621, %v1975
      %1978 = vst.msk [vmem:[%s605 + $0x8] sm:$0xff] %vm621, %v1976
      %s1979 = smul.u32 2, %s27
      %p1980 = scmp.lt.s32.totalorder %s1979, 1
      %s1981 = scalar_select %p1980, %s1979, 1
      %s1982 = smul.addr %s1981, 8
      %s1983 = scalar_lea.vmem %s12, %s1982
      // Predicated region
      $region73: #{transformer_encoder_parallel.1} parent=67 // pred_check
        %p1984 = pneg %p365
      $region74: #{transformer_encoder_parallel.1} parent=67 // pred_check_branch
        %1986 = sbr.rel (%p1984) target = $region76
      $region75: #{transformer_encoder_parallel.1} parent=67 // pred_region
        %s1987 = smul.u32 2, %s27
      $region76: #{transformer_encoder_parallel.1} parent=67 // pred_fallthru
        _
      // Predicated region
      $region77: #{transformer_encoder_parallel.1} parent=67 // pred_check
        %p1988 = pneg %p365
      $region78: #{transformer_encoder_parallel.1} parent=67 // pred_check_branch
        %1990 = sbr.rel (%p1988) target = $region80
      $region79: #{transformer_encoder_parallel.1} parent=67 // pred_region
        %s1991 = smul.u32 2, %s27
        %p1992 = scmp.lt.s32.totalorder %s1991, 1
        %s1993 = scalar_select %p1992, %s1991, 1
        %s1994 = smul.addr %s1993, 8
        %s1995 = scalar_lea.vmem %s12, %s1994
      $region80: #{transformer_encoder_parallel.1} parent=67 // pred_fallthru
        _
    $region68: #{transformer_encoder_parallel.1} parent=5 // pred_fallthru
      _
    %p1996 = scmp.le.s32.totalorder 2, %s18
    // Predicated region
    $region81: #{transformer_encoder_parallel.1} parent=5 // pred_check
      %p1997 = pneg %p1996
    $region82: #{transformer_encoder_parallel.1} parent=5 // pred_check_branch
      %1999 = sbr.rel (%p1997) target = $region84
    $region83: #{transformer_encoder_parallel.1} parent=5 // pred_region
      %s2000 = ssub.s32 %s18, 2
    $region84: #{transformer_encoder_parallel.1} parent=5 // pred_fallthru
      _
  $region6: #{transformer_encoder_parallel.1} parent=0 // loop_footer
    %s22 = sadd.s32 1, %s18
  $region7: #{transformer_encoder_parallel.1} parent=0 // loop_footer_branch
    %17 = sbr.rel target = $region3
  $region8: #{transformer_encoder_parallel.1} parent=0 // loop_exit
    _

</llo_original>
